<compile_context>
chip_gen: v6e
topology: v6e:2x2x1
jax: 0.10.0
libtpu: 0.0.40
codegen_flags: <defaults>
</compile_context>

<pallas_src>
import numpy as np
import jax
import jax.numpy as jnp
from jax.experimental import pallas as pl
from jax.experimental.pallas import tpu as pltpu

K_SPLIT = 4        # MixedOp partial-channel factor (self.k = 4) == shuffle groups
NUM_OPS = 5        # synthesized PRIMITIVES size
N_SUPPORTS = 3     # 2 fixed supports + 1 adaptive adjacency
N_CHEB = 3         # Chebyshev order


# ----------------------------------------------------------------------------
# Pallas kernel: whole Cell forward for one 128-lane tile of the packed batch.
# ----------------------------------------------------------------------------
def make_cell_kernel(CN, LT, steps):
    def kernel(x_ref, g_ref, o_ref, st_ref):
        # x_ref : (CN, LT)        one lane tile of the batch-packed input
        # g_ref : (CN, E*CN)      fused per-edge operators, concatenated along K
        # st_ref: (steps*CN, LT)  VMEM scratch holding states[0..steps-1] stacked
        st_ref[0:CN, :] = x_ref[...]          # state 0 = preprocess(s_prev) = s_prev
        offset = 0
        for i in range(steps):
            ks = offset * CN
            ke = (offset + i + 1) * CN
            # one MXU matmul per step: all (i+1) edges summed along K, f32 acc
            new_state = jnp.dot(
                g_ref[:, ks:ke],               # (CN, (i+1)*CN)
                st_ref[0:(i + 1) * CN, :],     # ((i+1)*CN, LT)
                preferred_element_type=jnp.float32)
            if i == steps - 1:
                o_ref[...] = new_state
            else:
                st_ref[(i + 1) * CN:(i + 2) * CN, :] = new_state
            offset += i + 1

    return kernel


# ----------------------------------------------------------------------------
# Wrapper-side fusion: each edge's MixedOp -> one (C*N, C*N) operator.
#
#   ans   = concat([temp1, xtemp2])            (blockdiag(G_mixed, I))
#   ans   = channel_shuffle(ans, groups)       (static row permutation)
#   edge  = weights2[e] * ans                  (scalar scale)
# so edge_contrib = G_full_e @ x  with x laid out as rows = ch*N + node.
# ----------------------------------------------------------------------------
def build_fused_edge_ops(weights, weights2, all_edge_params, shared, C, N, groups):
    c = C // groups
    CN, cN = C * N, c * N
    I_N = jnp.eye(N, dtype=jnp.float32)
    I_c = jnp.eye(c, dtype=jnp.float32)
    I_rest = jnp.eye(CN - cN, dtype=jnp.float32)
    supports = shared["supports"]
    cheb = shared["cheb"]
    alpha = shared["alpha"]

    # channel_shuffle(groups) as a static permutation of N-row channel blocks
    cpg = C // groups
    perm = np.zeros(CN, dtype=np.int32)
    for m in range(C):
        src = (m % groups) * cpg + (m // groups)
        perm[m * N:(m + 1) * N] = np.arange(src * N, (src + 1) * N)

    cols = []
    for e in range(weights.shape[0]):
        w = weights[e]
        p = all_edge_params[e]
        # MixedOp linear operator on the partial channel block (cN x cN)
        Gm = w[1] * jnp.kron(I_c, I_N)                        # skip_connect
        Gm = Gm + w[2] * jnp.kron(p["Wconv"].T, I_N)          # conv_1x1
        for s in range(supports.shape[0]):                    # diff_gcn
            Gm = Gm + w[3] * jnp.kron(p["Wdiff"][s].T, supports[s].T)
        for k in range(cheb.shape[0]):                        # cheb_gcn
            Gm = Gm + (w[4] * alpha) * jnp.kron(p["Wcheb"][k].T, cheb[k].T)
        # op 0 ('none') contributes zero.
        full = jnp.zeros((CN, CN), jnp.float32)
        full = full.at[:cN, :cN].set(Gm)                      # temp1 path
        full = full.at[cN:, cN:].set(I_rest)                  # xtemp2 identity path
        cols.append(weights2[e] * full[perm, :])              # shuffle + edge norm
    return jnp.concatenate(cols, axis=1)                      # (CN, E*CN)


def cell_forward_pallas(s_prev, weights, weights2, all_edge_params, shared, steps):
    """Cell.forward — s_prev: (B, C, N, L) NCHW.  Returns (B, C, N, L)."""
    B, C, N, L = s_prev.shape
    CN = C * N
    E = weights.shape[0]
    assert E == steps * (steps + 1) // 2

    G_all = build_fused_edge_ops(weights, weights2, all_edge_params, shared,
                                 C, N, K_SPLIT)

    # lane-dense packing: rows = (channel, node), columns = (batch, time)
    x2d = jnp.transpose(s_prev, (1, 2, 0, 3)).reshape(CN, B * L)

    total_lanes = B * L
    if total_lanes % 128 == 0 and total_lanes > 128:
        LT = 128   # TODO(synk): bump to 256 lane tiles on v6e/v7x to fill 2x256 MXU
    else:
        LT = total_lanes
    n_tiles = total_lanes // LT

    kernel = make_cell_kernel(CN, LT, steps)

    out2d = pl.pallas_call(
        kernel,
        out_shape=jax.ShapeDtypeStruct((CN, total_lanes), jnp.float32),
        grid=(n_tiles,),
        in_specs=[
            pl.BlockSpec((CN, LT), lambda t: (0, t)),          # packed states
            pl.BlockSpec((CN, E * CN), lambda t: (0, 0)),      # constant operators
        ],
        out_specs=pl.BlockSpec((CN, LT), lambda t: (0, t)),
        scratch_shapes=[pltpu.VMEM((steps * CN, LT), jnp.float32)],
        compiler_params=pltpu.CompilerParams(
            dimension_semantics=("parallel",)),
    )(x2d, G_all)

    return jnp.transpose(out2d.reshape(C, N, B, L), (2, 0, 1, 3))


# ----------------------------------------------------------------------------
# Pure-JAX reference (mirrors the PyTorch module structure, no fusion).
# ----------------------------------------------------------------------------
def channel_shuffle_jax(x, groups):
    bs, num_channels, height, width = x.shape
    cpg = num_channels // groups
    x = x.reshape(bs, groups, cpg, height, width)
    x = jnp.transpose(x, (0, 2, 1, 3, 4))
    return x.reshape(bs, -1, height, width)


def mixed_op_temp1_ref(xtemp, w_ops, alpha, supports, cheb, Wconv, Wdiff, Wcheb):
    x = xtemp                                                 # (B, c, N, L)
    out = w_ops[1] * x
    out = out + w_ops[2] * jnp.einsum('io,binl->bonl', Wconv, x)
    acc = jnp.zeros_like(x)
    for s in range(supports.shape[0]):
        h = jnp.einsum('vw,bivl->biwl', supports[s], x)
        acc = acc + jnp.einsum('io,biwl->bowl', Wdiff[s], h)
    out = out + w_ops[3] * acc
    acc2 = jnp.zeros_like(x)
    for k in range(cheb.shape[0]):
        h = jnp.einsum('vw,bivl->biwl', cheb[k], x)
        acc2 = acc2 + jnp.einsum('io,biwl->bowl', Wcheb[k], h)
    out = out + w_ops[4] * alpha * acc2
    return out


def cell_forward_ref(s_prev, weights, weights2, all_edge_params, shared, steps):
    states = [s_prev]
    offset = 0
    for i in range(steps):
        s = None
        for j, h in enumerate(states):
            e = offset + j
            C = h.shape[1]
            c = C // K_SPLIT
            xtemp, xtemp2 = h[:, :c], h[:, c:]
            temp1 = mixed_op_temp1_ref(
                xtemp, weights[e], shared["alpha"], shared["supports"],
                shared["cheb"], all_edge_params[e]["Wconv"],
                all_edge_params[e]["Wdiff"], all_edge_params[e]["Wcheb"])
            ans = channel_shuffle_jax(jnp.concatenate([temp1, xtemp2], axis=1),
                                      K_SPLIT)
            contrib = weights2[e] * ans
            s = contrib if s is None else s + contrib
        offset += len(states)
        states.append(s)
    return states[-1]


# ----------------------------------------------------------------------------
if __name__ == "__main__":
    B, C, N, L = 16, 16, 8, 16      # batch, hidden C, num_nodes, seq_len
    steps = 3
    num_edges = steps * (steps + 1) // 2                      # = 6
    c = C // K_SPLIT

    key = jax.random.PRNGKey(0)
    keys = jax.random.split(key, 8 + num_edges)

    # input (PyTorch NCHW: [bsize, hid_dim, num_nodes, seq_len])
    s_prev = jax.random.normal(keys[0], (B, C, N, L), jnp.float32)

    # architecture weights
    weights = jax.nn.softmax(
        jax.random.normal(keys[1], (num_edges, NUM_OPS), jnp.float32), axis=-1)
    weights2 = jax.nn.sigmoid(
        jax.random.normal(keys[2], (num_edges,), jnp.float32))

    # graph structure: 2 fixed row-stochastic supports + adaptive adjacency
    a1 = jax.nn.softmax(jax.random.normal(keys[3], (N, N), jnp.float32), axis=-1)
    a2 = jax.nn.softmax(jax.random.normal(keys[4], (N, N), jnp.float32), axis=-1)
    nodevec1 = jax.random.normal(keys[5], (N, 10), jnp.float32)
    nodevec2 = jax.random.normal(keys[6], (10, N), jnp.float32)
    adp = jax.nn.softmax(jax.nn.relu(nodevec1 @ nodevec2), axis=-1)
    supports = jnp.stack([a1, a2, adp], axis=0)               # (S, N, N)

    # Chebyshev matrices T0, T1, T2 of a synthetic normalized Laplacian
    sym = 0.5 * (a1 + a1.T)
    d = jnp.sum(sym, axis=-1)
    lap = jnp.eye(N) - sym / jnp.sqrt(d[:, None] * d[None, :])
    cheb = jnp.stack([jnp.eye(N), lap, 2.0 * lap @ lap - jnp.eye(N)], axis=0)

    alpha = jnp.float32(0.8)
    shared = {"supports": supports, "cheb": cheb, "alpha": alpha}

    # per-edge op parameters (each MixedOp owns its own weight tensors)
    all_edge_params = []
    for e in range(num_edges):
        ek = jax.random.split(keys[7 + e], 3)
        all_edge_params.append({
            "Wconv": 0.1 * jax.random.normal(ek[0], (c, c), jnp.float32),
            "Wdiff": 0.1 * jax.random.normal(ek[1], (N_SUPPORTS, c, c), jnp.float32),
            "Wcheb": 0.1 * jax.random.normal(ek[2], (N_CHEB, c, c), jnp.float32),
        })

    cell_fn = jax.jit(cell_forward_pallas, static_argnames=("steps",))
    out = cell_fn(s_prev, weights, weights2, all_edge_params, shared, steps=steps)
    out = jax.block_until_ready(out)

    ref = cell_forward_ref(s_prev, weights, weights2, all_edge_params, shared, steps)
    ref = jax.block_until_ready(ref)

    assert out.shape == (B, C, N, L)
    np.testing.assert_allclose(np.asarray(out), np.asarray(ref),
                               rtol=2e-4, atol=2e-4)
    print("KERNEL_OK")
</pallas_src>

<mosaic_0001>
module attributes {stable_mosaic.version = 11 : i64} {
  func.func @kernel(%arg0: i32, %arg1: memref<128x128xf32, #tpu.memory_space<vmem>>, %arg2: memref<128x768xf32, #tpu.memory_space<vmem>>, %arg3: memref<128x128xf32, #tpu.memory_space<vmem>>, %arg4: memref<384x128xf32, #tpu.memory_space<vmem>>) attributes {dimension_semantics = [#tpu.dimension_semantics<parallel>], iteration_bounds = array<i64: 2>, scalar_prefetch = 0 : i64, scratch_operands = 1 : i64, tpu.core_type = #tpu.core_type<tc>, window_params = [{transform_indices = @transform_0, window_bounds = array<i64: 128, 128>}, {pipeline_mode = #tpu.pipeline_mode<synchronous>, transform_indices = @transform_1, window_bounds = array<i64: 128, 768>}, {transform_indices = @transform_2, window_bounds = array<i64: 128, 128>}]} {
    %c0 = arith.constant 0 : index
    %c0_0 = arith.constant 0 : index
    %0 = vector.load %arg1[%c0, %c0_0] : memref<128x128xf32, #tpu.memory_space<vmem>>, vector<128x128xf32>
    %c0_1 = arith.constant 0 : index
    %c0_2 = arith.constant 0 : index
    %1 = vector.load %arg4[%c0_1, %c0_2] : memref<384x128xf32, #tpu.memory_space<vmem>>, vector<128x128xf32>
    tpu.vector_store %arg4[%c0_1, %c0_2], %0 {strides = array<i32>} : memref<384x128xf32, #tpu.memory_space<vmem>>, vector<128x128xf32>,
    %c0_3 = arith.constant 0 : index
    %c0_4 = arith.constant 0 : index
    %2 = vector.load %arg2[%c0_3, %c0_4] : memref<128x768xf32, #tpu.memory_space<vmem>>, vector<128x128xf32>
    %c0_5 = arith.constant 0 : index
    %c0_6 = arith.constant 0 : index
    %3 = vector.load %arg4[%c0_5, %c0_6] : memref<384x128xf32, #tpu.memory_space<vmem>>, vector<128x128xf32>
    %cst = arith.constant dense<0.000000e+00> : vector<128x128xf32>
    %4 = tpu.matmul %2, %3, %cst {dimension_numbers = #tpu.dot_dimension_numbers<[1], [0], [0], [1], [0, 0, 1, 1], [], []>} : vector<128x128xf32>, vector<128x128xf32>, vector<128x128xf32> -> vector<128x128xf32>
    %c128 = arith.constant 128 : index
    %c0_7 = arith.constant 0 : index
    %5 = vector.load %arg4[%c128, %c0_7] : memref<384x128xf32, #tpu.memory_space<vmem>>, vector<128x128xf32>
    tpu.vector_store %arg4[%c128, %c0_7], %4 {strides = array<i32>} : memref<384x128xf32, #tpu.memory_space<vmem>>, vector<128x128xf32>,
    %c0_8 = arith.constant 0 : index
    %c128_9 = arith.constant 128 : index
    %6 = vector.load %arg2[%c0_8, %c128_9] : memref<128x768xf32, #tpu.memory_space<vmem>>, vector<128x256xf32>
    %c0_10 = arith.constant 0 : index
    %c0_11 = arith.constant 0 : index
    %7 = vector.load %arg4[%c0_10, %c0_11] : memref<384x128xf32, #tpu.memory_space<vmem>>, vector<256x128xf32>
    %cst_12 = arith.constant dense<0.000000e+00> : vector<128x128xf32>
    %8 = tpu.matmul %6, %7, %cst_12 {dimension_numbers = #tpu.dot_dimension_numbers<[1], [0], [0], [1], [0, 0, 1, 1], [], []>} : vector<128x256xf32>, vector<256x128xf32>, vector<128x128xf32> -> vector<128x128xf32>
    %c256 = arith.constant 256 : index
    %c0_13 = arith.constant 0 : index
    %9 = vector.load %arg4[%c256, %c0_13] : memref<384x128xf32, #tpu.memory_space<vmem>>, vector<128x128xf32>
    tpu.vector_store %arg4[%c256, %c0_13], %8 {strides = array<i32>} : memref<384x128xf32, #tpu.memory_space<vmem>>, vector<128x128xf32>,
    %c0_14 = arith.constant 0 : index
    %c384 = arith.constant 384 : index
    %10 = vector.load %arg2[%c0_14, %c384] : memref<128x768xf32, #tpu.memory_space<vmem>>, vector<128x384xf32>
    %c0_15 = arith.constant 0 : index
    %c0_16 = arith.constant 0 : index
    %11 = vector.load %arg4[%c0_15, %c0_16] : memref<384x128xf32, #tpu.memory_space<vmem>>, vector<384x128xf32>
    %cst_17 = arith.constant dense<0.000000e+00> : vector<128x128xf32>
    %12 = tpu.matmul %10, %11, %cst_17 {dimension_numbers = #tpu.dot_dimension_numbers<[1], [0], [0], [1], [0, 0, 1, 1], [], []>} : vector<128x384xf32>, vector<384x128xf32>, vector<128x128xf32> -> vector<128x128xf32>
    %c0_18 = arith.constant 0 : index
    %c0_19 = arith.constant 0 : index
    %13 = vector.load %arg3[%c0_18, %c0_19] : memref<128x128xf32, #tpu.memory_space<vmem>>, vector<128x128xf32>
    tpu.vector_store %arg3[%c0_18, %c0_19], %12 {strides = array<i32>} : memref<128x128xf32, #tpu.memory_space<vmem>>, vector<128x128xf32>,
    return
  }
  func.func @transform_0(%arg0: i32) -> (i32, i32) {
    %c0_i32 = arith.constant 0 : i32
    %c0_i32_0 = arith.constant 0 : i32
    return %c0_i32, %arg0 : i32, i32
  }
  func.func @transform_1(%arg0: i32) -> (i32, i32) {
    %c0_i32 = arith.constant 0 : i32
    %c0_i32_0 = arith.constant 0 : i32
    %c0_i32_1 = arith.constant 0 : i32
    return %c0_i32, %c0_i32_0 : i32, i32
  }
  func.func @transform_2(%arg0: i32) -> (i32, i32) {
    %c0_i32 = arith.constant 0 : i32
    %c0_i32_0 = arith.constant 0 : i32
    return %c0_i32, %arg0 : i32, i32
  }
}

</mosaic_0001>

<llo_original>
// kernel: cell_forward_pallas.1
$region0: #{cell_forward_pallas.1}
  #allocation0 [shape = 'u32[]', space=smem, size = 0x4, offset = 0x4, fixed_abs, tag = 'smem constant byte address 0x4 - core index']
  #allocation1 [shape = 'u32[144,128]{1,0:T(1,128)}', space=vmem, size = 0x12000, scoped, tag = 'internal scratch']
  #allocation2 [shape = 'f32[384,128]{1,0:T(8,128)}', space=vmem, size = 0x30000, scoped, tag = 'scratch operand']
  %s0 = inlined_call_operand.vmem [shape: f32[128,256], index: 0, kind: input, shape index: {}]
  %s1 = inlined_call_operand.vmem [shape: f32[128,768], index: 1, kind: input, shape index: {}]
  %s2 = inlined_call_operand.vmem [shape: f32[128,256], index: 2, kind: output, shape index: {}]
  %s3 = sld [smem:[#allocation0]]
  $region113: #{cell_forward_pallas.1} parent=0
    _
  %s5 = ssub.s32 1, %s3
  %s6 = scalar_select 0, %s5, %s3
  $region1: #{cell_forward_pallas.1} parent=0
    #allocation3 [shape = 'u8[131072]{0}', space=vmem, size = 0x20000, scoped, tag = 'input window, operand 0']
    #allocation4 [shape = 'u8[131072]{0}', space=vmem, size = 0x20000, scoped, tag = 'output window, operand 0']
    loop: start=0, step=1, limit=4
    $region2: #{cell_forward_pallas.1} parent=1 // loop_pre_header
      _
    $region3: #{cell_forward_pallas.1} parent=1 // loop_header
      %s8 = sphi 0, %s12
      %p9 = scmp.ge.s32.totalorder %s8, 4
      %s18 = sphi 0, %s20
      %s21 = sphi 0, %s18
      %s22 = sphi 0, %s21
      %s38 = sphi 0, %s22
      %s42 = sphi 0, %s42
      %s44 = sphi 0, %s42
      %s45 = sphi 0, %s44
      %s59 = sphi 0, %s45
      %s65 = sphi 0, %s67
      %s68 = sphi 0, %s65
      %s69 = sphi 0, %s68
      %s85 = sphi 0, %s69
    $region4: #{cell_forward_pallas.1} parent=1 // loop_header_branch
      %11 = sbr.rel (%p9) target = $region8
    $region5: #{cell_forward_pallas.1} parent=1 // loop_body
      %s13 = ssub.s32 %s8, 1
      %s14 = ssub.s32 %s8, 2
      %s15 = sadd.s32 %s8, 1
      %s16 = ssub.s32 %s8, %s15
      %p17 = scmp.eq.s32.totalorder %s16, 0
      %s19 = sadd.s32 %s18, 1
      %s20 = scalar_select %p17, %s18, %s19
      %p23 = pneg %p17
      %p24 = scmp.eq.s32.totalorder %s8, 1
      %p25 = por %p23, %p24
      %p26 = scmp.ne.s32.totalorder %s18, %s21
      %p27 = scmp.eq.s32.totalorder %s8, 0
      %p28 = por %p26, %p27
      %p29 = scmp.ne.s32.totalorder %s18, %s21
      %p30 = scmp.eq.s32.totalorder %s13, 1
      %p31 = por %p29, %p30
      %p32 = scmp.ne.s32.totalorder %s21, %s22
      %p33 = scmp.eq.s32.totalorder %s13, 0
      %p34 = por %p32, %p33
      %p35 = scmp.ne.s32.totalorder %s21, %s22
      %p36 = scmp.eq.s32.totalorder %s14, 1
      %p37 = por %p35, %p36
      %p39 = scmp.ne.s32.totalorder %s22, %s38
      %p40 = scmp.eq.s32.totalorder %s14, 0
      %p41 = por %p39, %p40
      %s43 = sadd.s32 %s42, 1
      %p46 = scmp.eq.s32.totalorder %s8, 1
      %p47 = scmp.ne.s32.totalorder %s42, %s44
      %p48 = scmp.eq.s32.totalorder %s8, 0
      %p49 = por %p47, %p48
      %p50 = scmp.ne.s32.totalorder %s42, %s44
      %p51 = scmp.eq.s32.totalorder %s13, 1
      %p52 = por %p50, %p51
      %p53 = scmp.ne.s32.totalorder %s44, %s45
      %p54 = scmp.eq.s32.totalorder %s13, 0
      %p55 = por %p53, %p54
      %p56 = scmp.ne.s32.totalorder %s44, %s45
      %p57 = scmp.eq.s32.totalorder %s14, 1
      %p58 = por %p56, %p57
      %p60 = scmp.ne.s32.totalorder %s45, %s59
      %p61 = scmp.eq.s32.totalorder %s14, 0
      %p62 = por %p60, %p61
      %s63 = ssub.s32 %s8, %s15
      %p64 = scmp.eq.s32.totalorder %s63, 0
      %s66 = sadd.s32 %s65, 1
      %s67 = scalar_select %p64, %s65, %s66
      %p70 = pneg %p64
      %p71 = scmp.eq.s32.totalorder %s8, 1
      %p72 = por %p70, %p71
      %p73 = scmp.ne.s32.totalorder %s65, %s68
      %p74 = scmp.eq.s32.totalorder %s8, 0
      %p75 = por %p73, %p74
      %p76 = scmp.ne.s32.totalorder %s65, %s68
      %p77 = scmp.eq.s32.totalorder %s13, 1
      %p78 = por %p76, %p77
      %p79 = scmp.ne.s32.totalorder %s68, %s69
      %p80 = scmp.eq.s32.totalorder %s13, 0
      %p81 = por %p79, %p80
      %p82 = scmp.ne.s32.totalorder %s68, %s69
      %p83 = scmp.eq.s32.totalorder %s14, 1
      %p84 = por %p82, %p83
      %p86 = scmp.ne.s32.totalorder %s69, %s85
      %p87 = scmp.eq.s32.totalorder %s14, 0
      %p88 = por %p86, %p87
      %p89 = scmp.le.s32.totalorder 1, %s8
      %p90 = scmp.lt.s32.totalorder %s8, 3
      %p91 = pnand %p89, %p90
      %p92 = pneg %p91
      // Predicated region
      $region9: #{cell_forward_pallas.1} parent=5 // pred_check
        _
      $region10: #{cell_forward_pallas.1} parent=5 // pred_check_branch
        %94 = sbr.rel (%p91) target = $region12
      $region11: #{cell_forward_pallas.1} parent=5 // pred_region
        %s95 = ssub.s32 %s8, 1
        // Predicated region
        $region13: #{cell_forward_pallas.1} parent=11 // pred_check
          %p96 = pneg %p55
        $region14: #{cell_forward_pallas.1} parent=11 // pred_check_branch
          %98 = sbr.rel (%p96) target = $region16
        $region15: #{cell_forward_pallas.1} parent=11 // pred_region
          _
        $region16: #{cell_forward_pallas.1} parent=11 // pred_fallthru
          _
      $region12: #{cell_forward_pallas.1} parent=5 // pred_fallthru
        _
      %p99 = scmp.lt.s32.totalorder %s8, 2
      // Predicated region
      $region17: #{cell_forward_pallas.1} parent=5 // pred_check
        %p100 = pneg %p99
      $region18: #{cell_forward_pallas.1} parent=5 // pred_check_branch
        %102 = sbr.rel (%p100) target = $region20
      $region19: #{cell_forward_pallas.1} parent=5 // pred_region
        // Predicated region
        $region21: #{cell_forward_pallas.1} parent=19 // pred_check
          %p103 = pneg %p28
        $region22: #{cell_forward_pallas.1} parent=19 // pred_check_branch
          %105 = sbr.rel (%p103) target = $region24
        $region23: #{cell_forward_pallas.1} parent=19 // pred_region
          %s106 = sand.u32 %s18, 1
          %s107 = sand.u32 %s18, 1
          %s108 = smul.addr %s107, 128
          %s109 = scalar_lea.vmem [#allocation3], %s108
          %s110 = smul.addr %s8, 8
          %s111 = scalar_lea.vmem %s0, %s110
          // Predicated region
          $region25: #{cell_forward_pallas.1} parent=23 // pred_check
            _
          $region26: #{cell_forward_pallas.1} parent=23 // pred_check_branch
            %113 = sbr.rel (0) target = $region28
          $region27: #{cell_forward_pallas.1} parent=23 // pred_region
            // Predicated region
            $region29: #{cell_forward_pallas.1} parent=27 // pred_check
              _
            $region30: #{cell_forward_pallas.1} parent=27 // pred_check_branch
              %115 = sbr.rel (0) target = $region32
            $region31: #{cell_forward_pallas.1} parent=27 // pred_region
              // Predicated region
              $region44: #{cell_forward_pallas.1} parent=31 // pred_check
                _
              $region45: #{cell_forward_pallas.1} parent=31 // pred_check_branch
                %161 = sbr.rel (0) target = $region47
              $region46: #{cell_forward_pallas.1} parent=31 // pred_region
                loop: start=0, step=1, limit=1
                $region48: #{cell_forward_pallas.1} parent=46 // loop_pre_header
                  _
                $region49: #{cell_forward_pallas.1} parent=46 // loop_header
                  %s163 = sphi 0, %s167
                  %p164 = scmp.ge.s32.totalorder %s163, 1
                  %s168 = sphi %s111, %s111
                  %s169 = sphi %s109, %s109
                $region50: #{cell_forward_pallas.1} parent=46 // loop_header_branch
                  %166 = sbr.rel (%p164) target = $region54
                $region51: #{cell_forward_pallas.1} parent=46 // loop_body
                  %v170 = vld [vmem:[%s168] sm:$0xff]
                  %171 = vst [vmem:[%s169] sm:$0xff] %v170
                  %v172 = vld [vmem:[%s168 + $0x10] sm:$0xff]
                  %173 = vst [vmem:[%s169 + $0x8] sm:$0xff] %v172
                  %v174 = vld [vmem:[%s168 + $0x20] sm:$0xff]
                  %175 = vst [vmem:[%s169 + $0x10] sm:$0xff] %v174
                  %v176 = vld [vmem:[%s168 + $0x30] sm:$0xff]
                  %177 = vst [vmem:[%s169 + $0x18] sm:$0xff] %v176
                  %v178 = vld [vmem:[%s168 + $0x40] sm:$0xff]
                  %179 = vst [vmem:[%s169 + $0x20] sm:$0xff] %v178
                  %v180 = vld [vmem:[%s168 + $0x50] sm:$0xff]
                  %181 = vst [vmem:[%s169 + $0x28] sm:$0xff] %v180
                  %v182 = vld [vmem:[%s168 + $0x60] sm:$0xff]
                  %183 = vst [vmem:[%s169 + $0x30] sm:$0xff] %v182
                  %v184 = vld [vmem:[%s168 + $0x70] sm:$0xff]
                  %185 = vst [vmem:[%s169 + $0x38] sm:$0xff] %v184
                  %v186 = vld [vmem:[%s168 + $0x80] sm:$0xff]
                  %187 = vst [vmem:[%s169 + $0x40] sm:$0xff] %v186
                  %v188 = vld [vmem:[%s168 + $0x90] sm:$0xff]
                  %189 = vst [vmem:[%s169 + $0x48] sm:$0xff] %v188
                  %v190 = vld [vmem:[%s168 + $0xa0] sm:$0xff]
                  %191 = vst [vmem:[%s169 + $0x50] sm:$0xff] %v190
                  %v192 = vld [vmem:[%s168 + $0xb0] sm:$0xff]
                  %193 = vst [vmem:[%s169 + $0x58] sm:$0xff] %v192
                  %v194 = vld [vmem:[%s168 + $0xc0] sm:$0xff]
                  %195 = vst [vmem:[%s169 + $0x60] sm:$0xff] %v194
                  %v196 = vld [vmem:[%s168 + $0xd0] sm:$0xff]
                  %197 = vst [vmem:[%s169 + $0x68] sm:$0xff] %v196
                  %v198 = vld [vmem:[%s168 + $0xe0] sm:$0xff]
                  %199 = vst [vmem:[%s169 + $0x70] sm:$0xff] %v198
                  %v200 = vld [vmem:[%s168 + $0xf0] sm:$0xff]
                  %201 = vst [vmem:[%s169 + $0x78] sm:$0xff] %v200
                $region52: #{cell_forward_pallas.1} parent=46 // loop_footer
                  %s167 = sadd.s32 1, %s163
                $region53: #{cell_forward_pallas.1} parent=46 // loop_footer_branch
                  %162 = sbr.rel target = $region49
                $region54: #{cell_forward_pallas.1} parent=46 // loop_exit
                  _
              $region47: #{cell_forward_pallas.1} parent=31 // pred_fallthru
                _
              // Predicated region
              $region55: #{cell_forward_pallas.1} parent=31 // pred_check
                _
              $region56: #{cell_forward_pallas.1} parent=31 // pred_check_branch
                %203 = sbr.rel target = $region58
              $region57: #{cell_forward_pallas.1} parent=31 // pred_region
                _
              $region58: #{cell_forward_pallas.1} parent=31 // pred_fallthru
                _
            $region32: #{cell_forward_pallas.1} parent=27 // pred_fallthru
              _
            // Predicated region
            $region33: #{cell_forward_pallas.1} parent=27 // pred_check
              _
            $region34: #{cell_forward_pallas.1} parent=27 // pred_check_branch
              %117 = sbr.rel target = $region36
            $region35: #{cell_forward_pallas.1} parent=27 // pred_region
              %s119 = ssub.s32 256, 1
              loop: start=0, step=1, limit=1
              $region37: #{cell_forward_pallas.1} parent=35 // loop_pre_header
                _
              $region38: #{cell_forward_pallas.1} parent=35 // loop_header
                %s121 = sphi 0, %s125
                %p122 = scmp.ge.s32.totalorder %s121, 1
                %s126 = sphi %s111, %s111
                %s127 = sphi %s109, %s109
              $region39: #{cell_forward_pallas.1} parent=35 // loop_header_branch
                %124 = sbr.rel (%p122) target = $region43
              $region40: #{cell_forward_pallas.1} parent=35 // loop_body
                %v128 = vld [vmem:[%s126] sm:%s119]
                %129 = vst [vmem:[%s127] sm:%s119] %v128
                %v130 = vld [vmem:[%s126 + $0x10] sm:%s119]
                %131 = vst [vmem:[%s127 + $0x8] sm:%s119] %v130
                %v132 = vld [vmem:[%s126 + $0x20] sm:%s119]
                %133 = vst [vmem:[%s127 + $0x10] sm:%s119] %v132
                %v134 = vld [vmem:[%s126 + $0x30] sm:%s119]
                %135 = vst [vmem:[%s127 + $0x18] sm:%s119] %v134
                %v136 = vld [vmem:[%s126 + $0x40] sm:%s119]
                %137 = vst [vmem:[%s127 + $0x20] sm:%s119] %v136
                %v138 = vld [vmem:[%s126 + $0x50] sm:%s119]
                %139 = vst [vmem:[%s127 + $0x28] sm:%s119] %v138
                %v140 = vld [vmem:[%s126 + $0x60] sm:%s119]
                %141 = vst [vmem:[%s127 + $0x30] sm:%s119] %v140
                %v142 = vld [vmem:[%s126 + $0x70] sm:%s119]
                %143 = vst [vmem:[%s127 + $0x38] sm:%s119] %v142
                %v144 = vld [vmem:[%s126 + $0x80] sm:%s119]
                %145 = vst [vmem:[%s127 + $0x40] sm:%s119] %v144
                %v146 = vld [vmem:[%s126 + $0x90] sm:%s119]
                %147 = vst [vmem:[%s127 + $0x48] sm:%s119] %v146
                %v148 = vld [vmem:[%s126 + $0xa0] sm:%s119]
                %149 = vst [vmem:[%s127 + $0x50] sm:%s119] %v148
                %v150 = vld [vmem:[%s126 + $0xb0] sm:%s119]
                %151 = vst [vmem:[%s127 + $0x58] sm:%s119] %v150
                %v152 = vld [vmem:[%s126 + $0xc0] sm:%s119]
                %153 = vst [vmem:[%s127 + $0x60] sm:%s119] %v152
                %v154 = vld [vmem:[%s126 + $0xd0] sm:%s119]
                %155 = vst [vmem:[%s127 + $0x68] sm:%s119] %v154
                %v156 = vld [vmem:[%s126 + $0xe0] sm:%s119]
                %157 = vst [vmem:[%s127 + $0x70] sm:%s119] %v156
                %v158 = vld [vmem:[%s126 + $0xf0] sm:%s119]
                %159 = vst [vmem:[%s127 + $0x78] sm:%s119] %v158
              $region41: #{cell_forward_pallas.1} parent=35 // loop_footer
                %s125 = sadd.s32 1, %s121
              $region42: #{cell_forward_pallas.1} parent=35 // loop_footer_branch
                %120 = sbr.rel target = $region38
              $region43: #{cell_forward_pallas.1} parent=35 // loop_exit
                _
            $region36: #{cell_forward_pallas.1} parent=27 // pred_fallthru
              _
          $region28: #{cell_forward_pallas.1} parent=23 // pred_fallthru
            _
          %204 = vnop
        $region24: #{cell_forward_pallas.1} parent=19 // pred_fallthru
          _
      $region20: #{cell_forward_pallas.1} parent=5 // pred_fallthru
        _
      %p205 = scmp.le.s32.totalorder 1, %s8
      %p206 = scmp.lt.s32.totalorder %s8, 3
      %p207 = pnand %p205, %p206
      %p208 = pneg %p207
      // Predicated region
      $region59: #{cell_forward_pallas.1} parent=5 // pred_check
        _
      $region60: #{cell_forward_pallas.1} parent=5 // pred_check_branch
        %210 = sbr.rel (%p207) target = $region62
      $region61: #{cell_forward_pallas.1} parent=5 // pred_region
        %s211 = ssub.s32 %s8, 1
        %s212 = sand.u32 %s21, 1
        %s213 = sand.u32 %s21, 1
        %s214 = smul.addr %s213, 128
        %s215 = scalar_lea.vmem [#allocation3], %s214
        // Predicated region
        $region63: #{cell_forward_pallas.1} parent=61 // pred_check
          %p216 = pneg %p34
        $region64: #{cell_forward_pallas.1} parent=61 // pred_check_branch
          %218 = sbr.rel (%p216) target = $region66
        $region65: #{cell_forward_pallas.1} parent=61 // pred_region
          _
        $region66: #{cell_forward_pallas.1} parent=61 // pred_fallthru
          _
        %s219 = sand.u32 %s21, 1
        %s220 = sand.u32 %s21, 1
        %s221 = smul.addr %s220, 128
        %s222 = scalar_lea.vmem [#allocation3], %s221
        %p223 = pneg %p34
        %p224 = pneg %p31
        %p225 = pneg %p55
        %p226 = pneg %p52
        %p227 = pneg %p81
        %p228 = pneg %p78
        %s229 = sand.u32 %s68, 1
        %s230 = sand.u32 %s68, 1
        %s231 = smul.addr %s230, 128
        %s232 = scalar_lea.vmem [#allocation4], %s231
        %v233 = vld [vmem:[%s215] sm:$0xff]
        %v234 = vld [vmem:[%s215 + $0x8] sm:$0xff]
        %v235 = vld [vmem:[%s215 + $0x10] sm:$0xff]
        %v236 = vld [vmem:[%s215 + $0x18] sm:$0xff]
        %v237 = vld [vmem:[%s215 + $0x20] sm:$0xff]
        %v238 = vld [vmem:[%s215 + $0x28] sm:$0xff]
        %v239 = vld [vmem:[%s215 + $0x30] sm:$0xff]
        %v240 = vld [vmem:[%s215 + $0x38] sm:$0xff]
        %v241 = vld [vmem:[%s215 + $0x40] sm:$0xff]
        %v242 = vld [vmem:[%s215 + $0x48] sm:$0xff]
        %v243 = vld [vmem:[%s215 + $0x50] sm:$0xff]
        %v244 = vld [vmem:[%s215 + $0x58] sm:$0xff]
        %v245 = vld [vmem:[%s215 + $0x60] sm:$0xff]
        %v246 = vld [vmem:[%s215 + $0x68] sm:$0xff]
        %v247 = vld [vmem:[%s215 + $0x70] sm:$0xff]
        %v248 = vld [vmem:[%s215 + $0x78] sm:$0xff]
        %249 = vst [vmem:[#allocation2] sm:$0xff] %v233
        %250 = vst [vmem:[#allocation2 + $0x8] sm:$0xff] %v234
        %251 = vst [vmem:[#allocation2 + $0x10] sm:$0xff] %v235
        %252 = vst [vmem:[#allocation2 + $0x18] sm:$0xff] %v236
        %253 = vst [vmem:[#allocation2 + $0x20] sm:$0xff] %v237
        %254 = vst [vmem:[#allocation2 + $0x28] sm:$0xff] %v238
        %255 = vst [vmem:[#allocation2 + $0x30] sm:$0xff] %v239
        %256 = vst [vmem:[#allocation2 + $0x38] sm:$0xff] %v240
        %257 = vst [vmem:[#allocation2 + $0x40] sm:$0xff] %v241
        %258 = vst [vmem:[#allocation2 + $0x48] sm:$0xff] %v242
        %259 = vst [vmem:[#allocation2 + $0x50] sm:$0xff] %v243
        %260 = vst [vmem:[#allocation2 + $0x58] sm:$0xff] %v244
        %261 = vst [vmem:[#allocation2 + $0x60] sm:$0xff] %v245
        %262 = vst [vmem:[#allocation2 + $0x68] sm:$0xff] %v246
        %263 = vst [vmem:[#allocation2 + $0x70] sm:$0xff] %v247
        %264 = vst [vmem:[#allocation2 + $0x78] sm:$0xff] %v248
        %v265 = vld [vmem:[%s1] sm:$0xff]
        %v266 = vld [vmem:[%s1 + $0x30] sm:$0xff]
        %v267 = vld [vmem:[%s1 + $0x60] sm:$0xff]
        %v268 = vld [vmem:[%s1 + $0x90] sm:$0xff]
        %v269 = vld [vmem:[%s1 + $0xc0] sm:$0xff]
        %v270 = vld [vmem:[%s1 + $0xf0] sm:$0xff]
        %v271 = vld [vmem:[%s1 + $0x120] sm:$0xff]
        %v272 = vld [vmem:[%s1 + $0x150] sm:$0xff]
        %v273 = vld [vmem:[%s1 + $0x180] sm:$0xff]
        %v274 = vld [vmem:[%s1 + $0x1b0] sm:$0xff]
        %v275 = vld [vmem:[%s1 + $0x1e0] sm:$0xff]
        %v276 = vld [vmem:[%s1 + $0x210] sm:$0xff]
        %v277 = vld [vmem:[%s1 + $0x240] sm:$0xff]
        %v278 = vld [vmem:[%s1 + $0x270] sm:$0xff]
        %v279 = vld [vmem:[%s1 + $0x2a0] sm:$0xff]
        %v280 = vld [vmem:[%s1 + $0x2d0] sm:$0xff]
        %v281 = vld [vmem:[#allocation2] sm:$0xff]
        %v282 = vld [vmem:[#allocation2 + $0x8] sm:$0xff]
        %v283 = vld [vmem:[#allocation2 + $0x10] sm:$0xff]
        %v284 = vld [vmem:[#allocation2 + $0x18] sm:$0xff]
        %v285 = vld [vmem:[#allocation2 + $0x20] sm:$0xff]
        %v286 = vld [vmem:[#allocation2 + $0x28] sm:$0xff]
        %v287 = vld [vmem:[#allocation2 + $0x30] sm:$0xff]
        %v288 = vld [vmem:[#allocation2 + $0x38] sm:$0xff]
        %v289 = vld [vmem:[#allocation2 + $0x40] sm:$0xff]
        %v290 = vld [vmem:[#allocation2 + $0x48] sm:$0xff]
        %v291 = vld [vmem:[#allocation2 + $0x50] sm:$0xff]
        %v292 = vld [vmem:[#allocation2 + $0x58] sm:$0xff]
        %v293 = vld [vmem:[#allocation2 + $0x60] sm:$0xff]
        %v294 = vld [vmem:[#allocation2 + $0x68] sm:$0xff]
        %v295 = vld [vmem:[#allocation2 + $0x70] sm:$0xff]
        %v296 = vld [vmem:[#allocation2 + $0x78] sm:$0xff]
        %297 = vmatprep.subr.mxu0 0.0
        %298 = vmatpush1.msra.mxu0 %v296
        %299 = vmatprep.subr.mxu0 0.0
        %300 = vmatpush1.msra.mxu0 %v295
        %301 = vmatprep.subr.mxu0 0.0
        %302 = vmatpush1.msra.mxu0 %v294
        %303 = vmatprep.subr.mxu0 0.0
        %304 = vmatpush1.msra.mxu0 %v293
        %305 = vmatprep.subr.mxu0 0.0
        %306 = vmatpush1.msra.mxu0 %v292
        %307 = vmatprep.subr.mxu0 0.0
        %308 = vmatpush1.msra.mxu0 %v291
        %309 = vmatprep.subr.mxu0 0.0
        %310 = vmatpush1.msra.mxu0 %v290
        %311 = vmatprep.subr.mxu0 0.0
        %312 = vmatpush1.msra.mxu0 %v289
        %313 = vmatprep.subr.mxu0 0.0
        %314 = vmatpush1.msra.mxu0 %v288
        %315 = vmatprep.subr.mxu0 0.0
        %316 = vmatpush1.msra.mxu0 %v287
        %317 = vmatprep.subr.mxu0 0.0
        %318 = vmatpush1.msra.mxu0 %v286
        %319 = vmatprep.subr.mxu0 0.0
        %320 = vmatpush1.msra.mxu0 %v285
        %321 = vmatprep.subr.mxu0 0.0
        %322 = vmatpush1.msra.mxu0 %v284
        %323 = vmatprep.subr.mxu0 0.0
        %324 = vmatpush1.msra.mxu0 %v283
        %325 = vmatprep.subr.mxu0 0.0
        %326 = vmatpush1.msra.mxu0 %v282
        %327 = vmatprep.subr.mxu0 0.0
        %328 = vmatpush1.msra.mxu0 %v281
        %329 = vmatprep.subr.mxu0 0.0
        %330 = vmatpush2.msra.mxu0 0.0
        %331 = vmatprep.subr.mxu0 0.0
        %332 = vmatpush2.msra.mxu0 0.0
        %333 = vmatprep.subr.mxu0 0.0
        %334 = vmatpush2.msra.mxu0 0.0
        %335 = vmatprep.subr.mxu0 0.0
        %336 = vmatpush2.msra.mxu0 0.0
        %337 = vmatprep.subr.mxu0 0.0
        %338 = vmatpush2.msra.mxu0 0.0
        %339 = vmatprep.subr.mxu0 0.0
        %340 = vmatpush2.msra.mxu0 0.0
        %341 = vmatprep.subr.mxu0 0.0
        %342 = vmatpush2.msra.mxu0 0.0
        %343 = vmatprep.subr.mxu0 0.0
        %344 = vmatpush2.msra.mxu0 0.0
        %345 = vmatprep.subr.mxu0 0.0
        %346 = vmatpush2.msra.mxu0 0.0
        %347 = vmatprep.subr.mxu0 0.0
        %348 = vmatpush2.msra.mxu0 0.0
        %349 = vmatprep.subr.mxu0 0.0
        %350 = vmatpush2.msra.mxu0 0.0
        %351 = vmatprep.subr.mxu0 0.0
        %352 = vmatpush2.msra.mxu0 0.0
        %353 = vmatprep.subr.mxu0 0.0
        %354 = vmatpush2.msra.mxu0 0.0
        %355 = vmatprep.subr.mxu0 0.0
        %356 = vmatpush2.msra.mxu0 0.0
        %357 = vmatprep.subr.mxu0 0.0
        %358 = vmatpush2.msra.mxu0 0.0
        %359 = vmatprep.subr.mxu0 0.0
        %360 = vmatpush2.msra.mxu0 0.0
        %361 = vmatprep.mubr.f32.mxu0 0.0
        %362 = vmatmul.mubr.f32.gmra.mxu0 %v265
        %v363 = vpop.f32.mrf.mxu0
        %v364 = vadd.f32 0.0, %v363
        %v365 = vpop.f32.mrf.mxu0
        %366 = vmatprep.mubr.f32.mxu0 0.0
        %367 = vmatmul.mubr.f32.gmra.mxu0 %v266
        %v368 = vpop.f32.mrf.mxu0
        %v369 = vadd.f32 0.0, %v368
        %v370 = vpop.f32.mrf.mxu0
        %371 = vmatprep.mubr.f32.mxu0 0.0
        %372 = vmatmul.mubr.f32.gmra.mxu0 %v267
        %v373 = vpop.f32.mrf.mxu0
        %v374 = vadd.f32 0.0, %v373
        %v375 = vpop.f32.mrf.mxu0
        %376 = vmatprep.mubr.f32.mxu0 0.0
        %377 = vmatmul.mubr.f32.gmra.mxu0 %v268
        %v378 = vpop.f32.mrf.mxu0
        %v379 = vadd.f32 0.0, %v378
        %v380 = vpop.f32.mrf.mxu0
        %381 = vmatprep.mubr.f32.mxu0 0.0
        %382 = vmatmul.mubr.f32.gmra.mxu0 %v269
        %v383 = vpop.f32.mrf.mxu0
        %v384 = vadd.f32 0.0, %v383
        %v385 = vpop.f32.mrf.mxu0
        %386 = vmatprep.mubr.f32.mxu0 0.0
        %387 = vmatmul.mubr.f32.gmra.mxu0 %v270
        %v388 = vpop.f32.mrf.mxu0
        %v389 = vadd.f32 0.0, %v388
        %v390 = vpop.f32.mrf.mxu0
        %391 = vmatprep.mubr.f32.mxu0 0.0
        %392 = vmatmul.mubr.f32.gmra.mxu0 %v271
        %v393 = vpop.f32.mrf.mxu0
        %v394 = vadd.f32 0.0, %v393
        %v395 = vpop.f32.mrf.mxu0
        %396 = vmatprep.mubr.f32.mxu0 0.0
        %397 = vmatmul.mubr.f32.gmra.mxu0 %v272
        %v398 = vpop.f32.mrf.mxu0
        %v399 = vadd.f32 0.0, %v398
        %v400 = vpop.f32.mrf.mxu0
        %401 = vmatprep.mubr.f32.mxu0 0.0
        %402 = vmatmul.mubr.f32.gmra.mxu0 %v273
        %v403 = vpop.f32.mrf.mxu0
        %v404 = vadd.f32 0.0, %v403
        %v405 = vpop.f32.mrf.mxu0
        %406 = vmatprep.mubr.f32.mxu0 0.0
        %407 = vmatmul.mubr.f32.gmra.mxu0 %v274
        %v408 = vpop.f32.mrf.mxu0
        %v409 = vadd.f32 0.0, %v408
        %v410 = vpop.f32.mrf.mxu0
        %411 = vmatprep.mubr.f32.mxu0 0.0
        %412 = vmatmul.mubr.f32.gmra.mxu0 %v275
        %v413 = vpop.f32.mrf.mxu0
        %v414 = vadd.f32 0.0, %v413
        %v415 = vpop.f32.mrf.mxu0
        %416 = vmatprep.mubr.f32.mxu0 0.0
        %417 = vmatmul.mubr.f32.gmra.mxu0 %v276
        %v418 = vpop.f32.mrf.mxu0
        %v419 = vadd.f32 0.0, %v418
        %v420 = vpop.f32.mrf.mxu0
        %421 = vmatprep.mubr.f32.mxu0 0.0
        %422 = vmatmul.mubr.f32.gmra.mxu0 %v277
        %v423 = vpop.f32.mrf.mxu0
        %v424 = vadd.f32 0.0, %v423
        %v425 = vpop.f32.mrf.mxu0
        %426 = vmatprep.mubr.f32.mxu0 0.0
        %427 = vmatmul.mubr.f32.gmra.mxu0 %v278
        %v428 = vpop.f32.mrf.mxu0
        %v429 = vadd.f32 0.0, %v428
        %v430 = vpop.f32.mrf.mxu0
        %431 = vmatprep.mubr.f32.mxu0 0.0
        %432 = vmatmul.mubr.f32.gmra.mxu0 %v279
        %v433 = vpop.f32.mrf.mxu0
        %v434 = vadd.f32 0.0, %v433
        %v435 = vpop.f32.mrf.mxu0
        %436 = vmatprep.mubr.f32.mxu0 0.0
        %437 = vmatmul.mubr.f32.gmra.mxu0 %v280
        %v438 = vpop.f32.mrf.mxu0
        %v439 = vadd.f32 0.0, %v438
        %v440 = vpop.f32.mrf.mxu0
        %441 = vdwg.mxu0
        %442 = vst [vmem:[#allocation2 + $0x80] sm:$0xff] %v364
        %443 = vst [vmem:[#allocation2 + $0x88] sm:$0xff] %v369
        %444 = vst [vmem:[#allocation2 + $0x90] sm:$0xff] %v374
        %445 = vst [vmem:[#allocation2 + $0x98] sm:$0xff] %v379
        %446 = vst [vmem:[#allocation2 + $0xa0] sm:$0xff] %v384
        %447 = vst [vmem:[#allocation2 + $0xa8] sm:$0xff] %v389
        %448 = vst [vmem:[#allocation2 + $0xb0] sm:$0xff] %v394
        %449 = vst [vmem:[#allocation2 + $0xb8] sm:$0xff] %v399
        %450 = vst [vmem:[#allocation2 + $0xc0] sm:$0xff] %v404
        %451 = vst [vmem:[#allocation2 + $0xc8] sm:$0xff] %v409
        %452 = vst [vmem:[#allocation2 + $0xd0] sm:$0xff] %v414
        %453 = vst [vmem:[#allocation2 + $0xd8] sm:$0xff] %v419
        %454 = vst [vmem:[#allocation2 + $0xe0] sm:$0xff] %v424
        %455 = vst [vmem:[#allocation2 + $0xe8] sm:$0xff] %v429
        %456 = vst [vmem:[#allocation2 + $0xf0] sm:$0xff] %v434
        %457 = vst [vmem:[#allocation2 + $0xf8] sm:$0xff] %v439
        %v458 = vld [vmem:[%s1 + $0x8] sm:$0xff]
        %v459 = vld [vmem:[%s1 + $0x10] sm:$0xff]
        %v460 = vld [vmem:[%s1 + $0x38] sm:$0xff]
        %v461 = vld [vmem:[%s1 + $0x40] sm:$0xff]
        %v462 = vld [vmem:[%s1 + $0x68] sm:$0xff]
        %v463 = vld [vmem:[%s1 + $0x70] sm:$0xff]
        %v464 = vld [vmem:[%s1 + $0x98] sm:$0xff]
        %v465 = vld [vmem:[%s1 + $0xa0] sm:$0xff]
        %v466 = vld [vmem:[%s1 + $0xc8] sm:$0xff]
        %v467 = vld [vmem:[%s1 + $0xd0] sm:$0xff]
        %v468 = vld [vmem:[%s1 + $0xf8] sm:$0xff]
        %v469 = vld [vmem:[%s1 + $0x100] sm:$0xff]
        %v470 = vld [vmem:[%s1 + $0x128] sm:$0xff]
        %v471 = vld [vmem:[%s1 + $0x130] sm:$0xff]
        %v472 = vld [vmem:[%s1 + $0x158] sm:$0xff]
        %v473 = vld [vmem:[%s1 + $0x160] sm:$0xff]
        %v474 = vld [vmem:[%s1 + $0x188] sm:$0xff]
        %v475 = vld [vmem:[%s1 + $0x190] sm:$0xff]
        %v476 = vld [vmem:[%s1 + $0x1b8] sm:$0xff]
        %v477 = vld [vmem:[%s1 + $0x1c0] sm:$0xff]
        %v478 = vld [vmem:[%s1 + $0x1e8] sm:$0xff]
        %v479 = vld [vmem:[%s1 + $0x1f0] sm:$0xff]
        %v480 = vld [vmem:[%s1 + $0x218] sm:$0xff]
        %v481 = vld [vmem:[%s1 + $0x220] sm:$0xff]
        %v482 = vld [vmem:[%s1 + $0x248] sm:$0xff]
        %v483 = vld [vmem:[%s1 + $0x250] sm:$0xff]
        %v484 = vld [vmem:[%s1 + $0x278] sm:$0xff]
        %v485 = vld [vmem:[%s1 + $0x280] sm:$0xff]
        %v486 = vld [vmem:[%s1 + $0x2a8] sm:$0xff]
        %v487 = vld [vmem:[%s1 + $0x2b0] sm:$0xff]
        %v488 = vld [vmem:[%s1 + $0x2d8] sm:$0xff]
        %v489 = vld [vmem:[%s1 + $0x2e0] sm:$0xff]
        %v490 = vld [vmem:[#allocation2] sm:$0xff]
        %v491 = vld [vmem:[#allocation2 + $0x8] sm:$0xff]
        %v492 = vld [vmem:[#allocation2 + $0x10] sm:$0xff]
        %v493 = vld [vmem:[#allocation2 + $0x18] sm:$0xff]
        %v494 = vld [vmem:[#allocation2 + $0x20] sm:$0xff]
        %v495 = vld [vmem:[#allocation2 + $0x28] sm:$0xff]
        %v496 = vld [vmem:[#allocation2 + $0x30] sm:$0xff]
        %v497 = vld [vmem:[#allocation2 + $0x38] sm:$0xff]
        %v498 = vld [vmem:[#allocation2 + $0x40] sm:$0xff]
        %v499 = vld [vmem:[#allocation2 + $0x48] sm:$0xff]
        %v500 = vld [vmem:[#allocation2 + $0x50] sm:$0xff]
        %v501 = vld [vmem:[#allocation2 + $0x58] sm:$0xff]
        %v502 = vld [vmem:[#allocation2 + $0x60] sm:$0xff]
        %v503 = vld [vmem:[#allocation2 + $0x68] sm:$0xff]
        %v504 = vld [vmem:[#allocation2 + $0x70] sm:$0xff]
        %v505 = vld [vmem:[#allocation2 + $0x78] sm:$0xff]
        %v506 = vld [vmem:[#allocation2 + $0x80] sm:$0xff]
        %v507 = vld [vmem:[#allocation2 + $0x88] sm:$0xff]
        %v508 = vld [vmem:[#allocation2 + $0x90] sm:$0xff]
        %v509 = vld [vmem:[#allocation2 + $0x98] sm:$0xff]
        %v510 = vld [vmem:[#allocation2 + $0xa0] sm:$0xff]
        %v511 = vld [vmem:[#allocation2 + $0xa8] sm:$0xff]
        %v512 = vld [vmem:[#allocation2 + $0xb0] sm:$0xff]
        %v513 = vld [vmem:[#allocation2 + $0xb8] sm:$0xff]
        %v514 = vld [vmem:[#allocation2 + $0xc0] sm:$0xff]
        %v515 = vld [vmem:[#allocation2 + $0xc8] sm:$0xff]
        %v516 = vld [vmem:[#allocation2 + $0xd0] sm:$0xff]
        %v517 = vld [vmem:[#allocation2 + $0xd8] sm:$0xff]
        %v518 = vld [vmem:[#allocation2 + $0xe0] sm:$0xff]
        %v519 = vld [vmem:[#allocation2 + $0xe8] sm:$0xff]
        %v520 = vld [vmem:[#allocation2 + $0xf0] sm:$0xff]
        %v521 = vld [vmem:[#allocation2 + $0xf8] sm:$0xff]
        %522 = vmatprep.subr.mxu0 0.0
        %523 = vmatpush1.msra.mxu0 %v505
        %524 = vmatprep.subr.mxu0 0.0
        %525 = vmatpush1.msra.mxu0 %v504
        %526 = vmatprep.subr.mxu0 0.0
        %527 = vmatpush1.msra.mxu0 %v503
        %528 = vmatprep.subr.mxu0 0.0
        %529 = vmatpush1.msra.mxu0 %v502
        %530 = vmatprep.subr.mxu0 0.0
        %531 = vmatpush1.msra.mxu0 %v501
        %532 = vmatprep.subr.mxu0 0.0
        %533 = vmatpush1.msra.mxu0 %v500
        %534 = vmatprep.subr.mxu0 0.0
        %535 = vmatpush1.msra.mxu0 %v499
        %536 = vmatprep.subr.mxu0 0.0
        %537 = vmatpush1.msra.mxu0 %v498
        %538 = vmatprep.subr.mxu0 0.0
        %539 = vmatpush1.msra.mxu0 %v497
        %540 = vmatprep.subr.mxu0 0.0
        %541 = vmatpush1.msra.mxu0 %v496
        %542 = vmatprep.subr.mxu0 0.0
        %543 = vmatpush1.msra.mxu0 %v495
        %544 = vmatprep.subr.mxu0 0.0
        %545 = vmatpush1.msra.mxu0 %v494
        %546 = vmatprep.subr.mxu0 0.0
        %547 = vmatpush1.msra.mxu0 %v493
        %548 = vmatprep.subr.mxu0 0.0
        %549 = vmatpush1.msra.mxu0 %v492
        %550 = vmatprep.subr.mxu0 0.0
        %551 = vmatpush1.msra.mxu0 %v491
        %552 = vmatprep.subr.mxu0 0.0
        %553 = vmatpush1.msra.mxu0 %v490
        %554 = vmatprep.subr.mxu0 0.0
        %555 = vmatpush2.msra.mxu0 %v521
        %556 = vmatprep.subr.mxu0 0.0
        %557 = vmatpush2.msra.mxu0 %v520
        %558 = vmatprep.subr.mxu0 0.0
        %559 = vmatpush2.msra.mxu0 %v519
        %560 = vmatprep.subr.mxu0 0.0
        %561 = vmatpush2.msra.mxu0 %v518
        %562 = vmatprep.subr.mxu0 0.0
        %563 = vmatpush2.msra.mxu0 %v517
        %564 = vmatprep.subr.mxu0 0.0
        %565 = vmatpush2.msra.mxu0 %v516
        %566 = vmatprep.subr.mxu0 0.0
        %567 = vmatpush2.msra.mxu0 %v515
        %568 = vmatprep.subr.mxu0 0.0
        %569 = vmatpush2.msra.mxu0 %v514
        %570 = vmatprep.subr.mxu0 0.0
        %571 = vmatpush2.msra.mxu0 %v513
        %572 = vmatprep.subr.mxu0 0.0
        %573 = vmatpush2.msra.mxu0 %v512
        %574 = vmatprep.subr.mxu0 0.0
        %575 = vmatpush2.msra.mxu0 %v511
        %576 = vmatprep.subr.mxu0 0.0
        %577 = vmatpush2.msra.mxu0 %v510
        %578 = vmatprep.subr.mxu0 0.0
        %579 = vmatpush2.msra.mxu0 %v509
        %580 = vmatprep.subr.mxu0 0.0
        %581 = vmatpush2.msra.mxu0 %v508
        %582 = vmatprep.subr.mxu0 0.0
        %583 = vmatpush2.msra.mxu0 %v507
        %584 = vmatprep.subr.mxu0 0.0
        %585 = vmatpush2.msra.mxu0 %v506
        %586 = vmatprep.mubr.f32.mxu0 %v459
        %587 = vmatmul.mubr.f32.gmra.mxu0 %v458
        %v588 = vpop.f32.mrf.mxu0
        %v589 = vadd.f32 0.0, %v588
        %v590 = vpop.f32.mrf.mxu0
        %591 = vmatprep.mubr.f32.mxu0 %v461
        %592 = vmatmul.mubr.f32.gmra.mxu0 %v460
        %v593 = vpop.f32.mrf.mxu0
        %v594 = vadd.f32 0.0, %v593
        %v595 = vpop.f32.mrf.mxu0
        %596 = vmatprep.mubr.f32.mxu0 %v463
        %597 = vmatmul.mubr.f32.gmra.mxu0 %v462
        %v598 = vpop.f32.mrf.mxu0
        %v599 = vadd.f32 0.0, %v598
        %v600 = vpop.f32.mrf.mxu0
        %601 = vmatprep.mubr.f32.mxu0 %v465
        %602 = vmatmul.mubr.f32.gmra.mxu0 %v464
        %v603 = vpop.f32.mrf.mxu0
        %v604 = vadd.f32 0.0, %v603
        %v605 = vpop.f32.mrf.mxu0
        %606 = vmatprep.mubr.f32.mxu0 %v467
        %607 = vmatmul.mubr.f32.gmra.mxu0 %v466
        %v608 = vpop.f32.mrf.mxu0
        %v609 = vadd.f32 0.0, %v608
        %v610 = vpop.f32.mrf.mxu0
        %611 = vmatprep.mubr.f32.mxu0 %v469
        %612 = vmatmul.mubr.f32.gmra.mxu0 %v468
        %v613 = vpop.f32.mrf.mxu0
        %v614 = vadd.f32 0.0, %v613
        %v615 = vpop.f32.mrf.mxu0
        %616 = vmatprep.mubr.f32.mxu0 %v471
        %617 = vmatmul.mubr.f32.gmra.mxu0 %v470
        %v618 = vpop.f32.mrf.mxu0
        %v619 = vadd.f32 0.0, %v618
        %v620 = vpop.f32.mrf.mxu0
        %621 = vmatprep.mubr.f32.mxu0 %v473
        %622 = vmatmul.mubr.f32.gmra.mxu0 %v472
        %v623 = vpop.f32.mrf.mxu0
        %v624 = vadd.f32 0.0, %v623
        %v625 = vpop.f32.mrf.mxu0
        %626 = vmatprep.mubr.f32.mxu0 %v475
        %627 = vmatmul.mubr.f32.gmra.mxu0 %v474
        %v628 = vpop.f32.mrf.mxu0
        %v629 = vadd.f32 0.0, %v628
        %v630 = vpop.f32.mrf.mxu0
        %631 = vmatprep.mubr.f32.mxu0 %v477
        %632 = vmatmul.mubr.f32.gmra.mxu0 %v476
        %v633 = vpop.f32.mrf.mxu0
        %v634 = vadd.f32 0.0, %v633
        %v635 = vpop.f32.mrf.mxu0
        %636 = vmatprep.mubr.f32.mxu0 %v479
        %637 = vmatmul.mubr.f32.gmra.mxu0 %v478
        %v638 = vpop.f32.mrf.mxu0
        %v639 = vadd.f32 0.0, %v638
        %v640 = vpop.f32.mrf.mxu0
        %641 = vmatprep.mubr.f32.mxu0 %v481
        %642 = vmatmul.mubr.f32.gmra.mxu0 %v480
        %v643 = vpop.f32.mrf.mxu0
        %v644 = vadd.f32 0.0, %v643
        %v645 = vpop.f32.mrf.mxu0
        %646 = vmatprep.mubr.f32.mxu0 %v483
        %647 = vmatmul.mubr.f32.gmra.mxu0 %v482
        %v648 = vpop.f32.mrf.mxu0
        %v649 = vadd.f32 0.0, %v648
        %v650 = vpop.f32.mrf.mxu0
        %651 = vmatprep.mubr.f32.mxu0 %v485
        %652 = vmatmul.mubr.f32.gmra.mxu0 %v484
        %v653 = vpop.f32.mrf.mxu0
        %v654 = vadd.f32 0.0, %v653
        %v655 = vpop.f32.mrf.mxu0
        %656 = vmatprep.mubr.f32.mxu0 %v487
        %657 = vmatmul.mubr.f32.gmra.mxu0 %v486
        %v658 = vpop.f32.mrf.mxu0
        %v659 = vadd.f32 0.0, %v658
        %v660 = vpop.f32.mrf.mxu0
        %661 = vmatprep.mubr.f32.mxu0 %v489
        %662 = vmatmul.mubr.f32.gmra.mxu0 %v488
        %v663 = vpop.f32.mrf.mxu0
        %v664 = vadd.f32 0.0, %v663
        %v665 = vpop.f32.mrf.mxu0
        %666 = vdwg.mxu0
        %667 = vst [vmem:[#allocation2 + $0x100] sm:$0xff] %v589
        %668 = vst [vmem:[#allocation2 + $0x108] sm:$0xff] %v594
        %669 = vst [vmem:[#allocation2 + $0x110] sm:$0xff] %v599
        %670 = vst [vmem:[#allocation2 + $0x118] sm:$0xff] %v604
        %671 = vst [vmem:[#allocation2 + $0x120] sm:$0xff] %v609
        %672 = vst [vmem:[#allocation2 + $0x128] sm:$0xff] %v614
        %673 = vst [vmem:[#allocation2 + $0x130] sm:$0xff] %v619
        %674 = vst [vmem:[#allocation2 + $0x138] sm:$0xff] %v624
        %675 = vst [vmem:[#allocation2 + $0x140] sm:$0xff] %v629
        %676 = vst [vmem:[#allocation2 + $0x148] sm:$0xff] %v634
        %677 = vst [vmem:[#allocation2 + $0x150] sm:$0xff] %v639
        %678 = vst [vmem:[#allocation2 + $0x158] sm:$0xff] %v644
        %679 = vst [vmem:[#allocation2 + $0x160] sm:$0xff] %v649
        %680 = vst [vmem:[#allocation2 + $0x168] sm:$0xff] %v654
        %681 = vst [vmem:[#allocation2 + $0x170] sm:$0xff] %v659
        %682 = vst [vmem:[#allocation2 + $0x178] sm:$0xff] %v664
        %v683 = vld [vmem:[%s1 + $0x18] sm:$0xff]
        %v684 = vld [vmem:[%s1 + $0x20] sm:$0xff]
        %v685 = vld [vmem:[%s1 + $0x28] sm:$0xff]
        %v686 = vld [vmem:[%s1 + $0x48] sm:$0xff]
        %v687 = vld [vmem:[%s1 + $0x50] sm:$0xff]
        %v688 = vld [vmem:[%s1 + $0x58] sm:$0xff]
        %v689 = vld [vmem:[%s1 + $0x78] sm:$0xff]
        %v690 = vld [vmem:[%s1 + $0x80] sm:$0xff]
        %v691 = vld [vmem:[%s1 + $0x88] sm:$0xff]
        %v692 = vld [vmem:[%s1 + $0xa8] sm:$0xff]
        %v693 = vld [vmem:[%s1 + $0xb0] sm:$0xff]
        %v694 = vld [vmem:[%s1 + $0xb8] sm:$0xff]
        %v695 = vld [vmem:[%s1 + $0xd8] sm:$0xff]
        %v696 = vld [vmem:[%s1 + $0xe0] sm:$0xff]
        %v697 = vld [vmem:[%s1 + $0xe8] sm:$0xff]
        %v698 = vld [vmem:[%s1 + $0x108] sm:$0xff]
        %v699 = vld [vmem:[%s1 + $0x110] sm:$0xff]
        %v700 = vld [vmem:[%s1 + $0x118] sm:$0xff]
        %v701 = vld [vmem:[%s1 + $0x138] sm:$0xff]
        %v702 = vld [vmem:[%s1 + $0x140] sm:$0xff]
        %v703 = vld [vmem:[%s1 + $0x148] sm:$0xff]
        %v704 = vld [vmem:[%s1 + $0x168] sm:$0xff]
        %v705 = vld [vmem:[%s1 + $0x170] sm:$0xff]
        %v706 = vld [vmem:[%s1 + $0x178] sm:$0xff]
        %v707 = vld [vmem:[%s1 + $0x198] sm:$0xff]
        %v708 = vld [vmem:[%s1 + $0x1a0] sm:$0xff]
        %v709 = vld [vmem:[%s1 + $0x1a8] sm:$0xff]
        %v710 = vld [vmem:[%s1 + $0x1c8] sm:$0xff]
        %v711 = vld [vmem:[%s1 + $0x1d0] sm:$0xff]
        %v712 = vld [vmem:[%s1 + $0x1d8] sm:$0xff]
        %v713 = vld [vmem:[%s1 + $0x1f8] sm:$0xff]
        %v714 = vld [vmem:[%s1 + $0x200] sm:$0xff]
        %v715 = vld [vmem:[%s1 + $0x208] sm:$0xff]
        %v716 = vld [vmem:[%s1 + $0x228] sm:$0xff]
        %v717 = vld [vmem:[%s1 + $0x230] sm:$0xff]
        %v718 = vld [vmem:[%s1 + $0x238] sm:$0xff]
        %v719 = vld [vmem:[%s1 + $0x258] sm:$0xff]
        %v720 = vld [vmem:[%s1 + $0x260] sm:$0xff]
        %v721 = vld [vmem:[%s1 + $0x268] sm:$0xff]
        %v722 = vld [vmem:[%s1 + $0x288] sm:$0xff]
        %v723 = vld [vmem:[%s1 + $0x290] sm:$0xff]
        %v724 = vld [vmem:[%s1 + $0x298] sm:$0xff]
        %v725 = vld [vmem:[%s1 + $0x2b8] sm:$0xff]
        %v726 = vld [vmem:[%s1 + $0x2c0] sm:$0xff]
        %v727 = vld [vmem:[%s1 + $0x2c8] sm:$0xff]
        %v728 = vld [vmem:[%s1 + $0x2e8] sm:$0xff]
        %v729 = vld [vmem:[%s1 + $0x2f0] sm:$0xff]
        %v730 = vld [vmem:[%s1 + $0x2f8] sm:$0xff]
        %v731 = vld [vmem:[#allocation2] sm:$0xff]
        %v732 = vld [vmem:[#allocation2 + $0x8] sm:$0xff]
        %v733 = vld [vmem:[#allocation2 + $0x10] sm:$0xff]
        %v734 = vld [vmem:[#allocation2 + $0x18] sm:$0xff]
        %v735 = vld [vmem:[#allocation2 + $0x20] sm:$0xff]
        %v736 = vld [vmem:[#allocation2 + $0x28] sm:$0xff]
        %v737 = vld [vmem:[#allocation2 + $0x30] sm:$0xff]
        %v738 = vld [vmem:[#allocation2 + $0x38] sm:$0xff]
        %v739 = vld [vmem:[#allocation2 + $0x40] sm:$0xff]
        %v740 = vld [vmem:[#allocation2 + $0x48] sm:$0xff]
        %v741 = vld [vmem:[#allocation2 + $0x50] sm:$0xff]
        %v742 = vld [vmem:[#allocation2 + $0x58] sm:$0xff]
        %v743 = vld [vmem:[#allocation2 + $0x60] sm:$0xff]
        %v744 = vld [vmem:[#allocation2 + $0x68] sm:$0xff]
        %v745 = vld [vmem:[#allocation2 + $0x70] sm:$0xff]
        %v746 = vld [vmem:[#allocation2 + $0x78] sm:$0xff]
        %v747 = vld [vmem:[#allocation2 + $0x80] sm:$0xff]
        %v748 = vld [vmem:[#allocation2 + $0x88] sm:$0xff]
        %v749 = vld [vmem:[#allocation2 + $0x90] sm:$0xff]
        %v750 = vld [vmem:[#allocation2 + $0x98] sm:$0xff]
        %v751 = vld [vmem:[#allocation2 + $0xa0] sm:$0xff]
        %v752 = vld [vmem:[#allocation2 + $0xa8] sm:$0xff]
        %v753 = vld [vmem:[#allocation2 + $0xb0] sm:$0xff]
        %v754 = vld [vmem:[#allocation2 + $0xb8] sm:$0xff]
        %v755 = vld [vmem:[#allocation2 + $0xc0] sm:$0xff]
        %v756 = vld [vmem:[#allocation2 + $0xc8] sm:$0xff]
        %v757 = vld [vmem:[#allocation2 + $0xd0] sm:$0xff]
        %v758 = vld [vmem:[#allocation2 + $0xd8] sm:$0xff]
        %v759 = vld [vmem:[#allocation2 + $0xe0] sm:$0xff]
        %v760 = vld [vmem:[#allocation2 + $0xe8] sm:$0xff]
        %v761 = vld [vmem:[#allocation2 + $0xf0] sm:$0xff]
        %v762 = vld [vmem:[#allocation2 + $0xf8] sm:$0xff]
        %v763 = vld [vmem:[#allocation2 + $0x100] sm:$0xff]
        %v764 = vld [vmem:[#allocation2 + $0x108] sm:$0xff]
        %v765 = vld [vmem:[#allocation2 + $0x110] sm:$0xff]
        %v766 = vld [vmem:[#allocation2 + $0x118] sm:$0xff]
        %v767 = vld [vmem:[#allocation2 + $0x120] sm:$0xff]
        %v768 = vld [vmem:[#allocation2 + $0x128] sm:$0xff]
        %v769 = vld [vmem:[#allocation2 + $0x130] sm:$0xff]
        %v770 = vld [vmem:[#allocation2 + $0x138] sm:$0xff]
        %v771 = vld [vmem:[#allocation2 + $0x140] sm:$0xff]
        %v772 = vld [vmem:[#allocation2 + $0x148] sm:$0xff]
        %v773 = vld [vmem:[#allocation2 + $0x150] sm:$0xff]
        %v774 = vld [vmem:[#allocation2 + $0x158] sm:$0xff]
        %v775 = vld [vmem:[#allocation2 + $0x160] sm:$0xff]
        %v776 = vld [vmem:[#allocation2 + $0x168] sm:$0xff]
        %v777 = vld [vmem:[#allocation2 + $0x170] sm:$0xff]
        %v778 = vld [vmem:[#allocation2 + $0x178] sm:$0xff]
        %779 = vmatprep.subr.mxu0 0.0
        %780 = vmatpush1.msra.mxu0 %v746
        %781 = vmatprep.subr.mxu0 0.0
        %782 = vmatpush1.msra.mxu0 %v745
        %783 = vmatprep.subr.mxu0 0.0
        %784 = vmatpush1.msra.mxu0 %v744
        %785 = vmatprep.subr.mxu0 0.0
        %786 = vmatpush1.msra.mxu0 %v743
        %787 = vmatprep.subr.mxu0 0.0
        %788 = vmatpush1.msra.mxu0 %v742
        %789 = vmatprep.subr.mxu0 0.0
        %790 = vmatpush1.msra.mxu0 %v741
        %791 = vmatprep.subr.mxu0 0.0
        %792 = vmatpush1.msra.mxu0 %v740
        %793 = vmatprep.subr.mxu0 0.0
        %794 = vmatpush1.msra.mxu0 %v739
        %795 = vmatprep.subr.mxu0 0.0
        %796 = vmatpush1.msra.mxu0 %v738
        %797 = vmatprep.subr.mxu0 0.0
        %798 = vmatpush1.msra.mxu0 %v737
        %799 = vmatprep.subr.mxu0 0.0
        %800 = vmatpush1.msra.mxu0 %v736
        %801 = vmatprep.subr.mxu0 0.0
        %802 = vmatpush1.msra.mxu0 %v735
        %803 = vmatprep.subr.mxu0 0.0
        %804 = vmatpush1.msra.mxu0 %v734
        %805 = vmatprep.subr.mxu0 0.0
        %806 = vmatpush1.msra.mxu0 %v733
        %807 = vmatprep.subr.mxu0 0.0
        %808 = vmatpush1.msra.mxu0 %v732
        %809 = vmatprep.subr.mxu0 0.0
        %810 = vmatpush1.msra.mxu0 %v731
        %811 = vmatprep.subr.mxu0 0.0
        %812 = vmatpush2.msra.mxu0 %v762
        %813 = vmatprep.subr.mxu0 0.0
        %814 = vmatpush2.msra.mxu0 %v761
        %815 = vmatprep.subr.mxu0 0.0
        %816 = vmatpush2.msra.mxu0 %v760
        %817 = vmatprep.subr.mxu0 0.0
        %818 = vmatpush2.msra.mxu0 %v759
        %819 = vmatprep.subr.mxu0 0.0
        %820 = vmatpush2.msra.mxu0 %v758
        %821 = vmatprep.subr.mxu0 0.0
        %822 = vmatpush2.msra.mxu0 %v757
        %823 = vmatprep.subr.mxu0 0.0
        %824 = vmatpush2.msra.mxu0 %v756
        %825 = vmatprep.subr.mxu0 0.0
        %826 = vmatpush2.msra.mxu0 %v755
        %827 = vmatprep.subr.mxu0 0.0
        %828 = vmatpush2.msra.mxu0 %v754
        %829 = vmatprep.subr.mxu0 0.0
        %830 = vmatpush2.msra.mxu0 %v753
        %831 = vmatprep.subr.mxu0 0.0
        %832 = vmatpush2.msra.mxu0 %v752
        %833 = vmatprep.subr.mxu0 0.0
        %834 = vmatpush2.msra.mxu0 %v751
        %835 = vmatprep.subr.mxu0 0.0
        %836 = vmatpush2.msra.mxu0 %v750
        %837 = vmatprep.subr.mxu0 0.0
        %838 = vmatpush2.msra.mxu0 %v749
        %839 = vmatprep.subr.mxu0 0.0
        %840 = vmatpush2.msra.mxu0 %v748
        %841 = vmatprep.subr.mxu0 0.0
        %842 = vmatpush2.msra.mxu0 %v747
        %843 = vmatprep.mubr.f32.mxu0 %v684
        %844 = vmatmul.mubr.f32.gmra.mxu0 %v683
        %v845 = vpop.f32.mrf.mxu0
        %v846 = vadd.f32 0.0, %v845
        %v847 = vpop.f32.mrf.mxu0
        %848 = vmatprep.mubr.f32.mxu0 %v687
        %849 = vmatmul.mubr.f32.gmra.mxu0 %v686
        %v850 = vpop.f32.mrf.mxu0
        %v851 = vadd.f32 0.0, %v850
        %v852 = vpop.f32.mrf.mxu0
        %853 = vmatprep.mubr.f32.mxu0 %v690
        %854 = vmatmul.mubr.f32.gmra.mxu0 %v689
        %v855 = vpop.f32.mrf.mxu0
        %v856 = vadd.f32 0.0, %v855
        %v857 = vpop.f32.mrf.mxu0
        %858 = vmatprep.mubr.f32.mxu0 %v693
        %859 = vmatmul.mubr.f32.gmra.mxu0 %v692
        %v860 = vpop.f32.mrf.mxu0
        %v861 = vadd.f32 0.0, %v860
        %v862 = vpop.f32.mrf.mxu0
        %863 = vmatprep.mubr.f32.mxu0 %v696
        %864 = vmatmul.mubr.f32.gmra.mxu0 %v695
        %v865 = vpop.f32.mrf.mxu0
        %v866 = vadd.f32 0.0, %v865
        %v867 = vpop.f32.mrf.mxu0
        %868 = vmatprep.mubr.f32.mxu0 %v699
        %869 = vmatmul.mubr.f32.gmra.mxu0 %v698
        %v870 = vpop.f32.mrf.mxu0
        %v871 = vadd.f32 0.0, %v870
        %v872 = vpop.f32.mrf.mxu0
        %873 = vmatprep.mubr.f32.mxu0 %v702
        %874 = vmatmul.mubr.f32.gmra.mxu0 %v701
        %v875 = vpop.f32.mrf.mxu0
        %v876 = vadd.f32 0.0, %v875
        %v877 = vpop.f32.mrf.mxu0
        %878 = vmatprep.mubr.f32.mxu0 %v705
        %879 = vmatmul.mubr.f32.gmra.mxu0 %v704
        %v880 = vpop.f32.mrf.mxu0
        %v881 = vadd.f32 0.0, %v880
        %v882 = vpop.f32.mrf.mxu0
        %883 = vmatprep.mubr.f32.mxu0 %v708
        %884 = vmatmul.mubr.f32.gmra.mxu0 %v707
        %v885 = vpop.f32.mrf.mxu0
        %v886 = vadd.f32 0.0, %v885
        %v887 = vpop.f32.mrf.mxu0
        %888 = vmatprep.mubr.f32.mxu0 %v711
        %889 = vmatmul.mubr.f32.gmra.mxu0 %v710
        %v890 = vpop.f32.mrf.mxu0
        %v891 = vadd.f32 0.0, %v890
        %v892 = vpop.f32.mrf.mxu0
        %893 = vmatprep.mubr.f32.mxu0 %v714
        %894 = vmatmul.mubr.f32.gmra.mxu0 %v713
        %v895 = vpop.f32.mrf.mxu0
        %v896 = vadd.f32 0.0, %v895
        %v897 = vpop.f32.mrf.mxu0
        %898 = vmatprep.mubr.f32.mxu0 %v717
        %899 = vmatmul.mubr.f32.gmra.mxu0 %v716
        %v900 = vpop.f32.mrf.mxu0
        %v901 = vadd.f32 0.0, %v900
        %v902 = vpop.f32.mrf.mxu0
        %903 = vmatprep.mubr.f32.mxu0 %v720
        %904 = vmatmul.mubr.f32.gmra.mxu0 %v719
        %v905 = vpop.f32.mrf.mxu0
        %v906 = vadd.f32 0.0, %v905
        %v907 = vpop.f32.mrf.mxu0
        %908 = vmatprep.mubr.f32.mxu0 %v723
        %909 = vmatmul.mubr.f32.gmra.mxu0 %v722
        %v910 = vpop.f32.mrf.mxu0
        %v911 = vadd.f32 0.0, %v910
        %v912 = vpop.f32.mrf.mxu0
        %913 = vmatprep.mubr.f32.mxu0 %v726
        %914 = vmatmul.mubr.f32.gmra.mxu0 %v725
        %v915 = vpop.f32.mrf.mxu0
        %v916 = vadd.f32 0.0, %v915
        %v917 = vpop.f32.mrf.mxu0
        %918 = vmatprep.mubr.f32.mxu0 %v729
        %919 = vmatmul.mubr.f32.gmra.mxu0 %v728
        %v920 = vpop.f32.mrf.mxu0
        %v921 = vadd.f32 0.0, %v920
        %v922 = vpop.f32.mrf.mxu0
        %923 = vdwg.mxu0
        %924 = vmatprep.subr.mxu0 0.0
        %925 = vmatpush1.msra.mxu0 %v778
        %926 = vmatprep.subr.mxu0 0.0
        %927 = vmatpush1.msra.mxu0 %v777
        %928 = vmatprep.subr.mxu0 0.0
        %929 = vmatpush1.msra.mxu0 %v776
        %930 = vmatprep.subr.mxu0 0.0
        %931 = vmatpush1.msra.mxu0 %v775
        %932 = vmatprep.subr.mxu0 0.0
        %933 = vmatpush1.msra.mxu0 %v774
        %934 = vmatprep.subr.mxu0 0.0
        %935 = vmatpush1.msra.mxu0 %v773
        %936 = vmatprep.subr.mxu0 0.0
        %937 = vmatpush1.msra.mxu0 %v772
        %938 = vmatprep.subr.mxu0 0.0
        %939 = vmatpush1.msra.mxu0 %v771
        %940 = vmatprep.subr.mxu0 0.0
        %941 = vmatpush1.msra.mxu0 %v770
        %942 = vmatprep.subr.mxu0 0.0
        %943 = vmatpush1.msra.mxu0 %v769
        %944 = vmatprep.subr.mxu0 0.0
        %945 = vmatpush1.msra.mxu0 %v768
        %946 = vmatprep.subr.mxu0 0.0
        %947 = vmatpush1.msra.mxu0 %v767
        %948 = vmatprep.subr.mxu0 0.0
        %949 = vmatpush1.msra.mxu0 %v766
        %950 = vmatprep.subr.mxu0 0.0
        %951 = vmatpush1.msra.mxu0 %v765
        %952 = vmatprep.subr.mxu0 0.0
        %953 = vmatpush1.msra.mxu0 %v764
        %954 = vmatprep.subr.mxu0 0.0
        %955 = vmatpush1.msra.mxu0 %v763
        %956 = vmatprep.subr.mxu0 0.0
        %957 = vmatpush2.msra.mxu0 0.0
        %958 = vmatprep.subr.mxu0 0.0
        %959 = vmatpush2.msra.mxu0 0.0
        %960 = vmatprep.subr.mxu0 0.0
        %961 = vmatpush2.msra.mxu0 0.0
        %962 = vmatprep.subr.mxu0 0.0
        %963 = vmatpush2.msra.mxu0 0.0
        %964 = vmatprep.subr.mxu0 0.0
        %965 = vmatpush2.msra.mxu0 0.0
        %966 = vmatprep.subr.mxu0 0.0
        %967 = vmatpush2.msra.mxu0 0.0
        %968 = vmatprep.subr.mxu0 0.0
        %969 = vmatpush2.msra.mxu0 0.0
        %970 = vmatprep.subr.mxu0 0.0
        %971 = vmatpush2.msra.mxu0 0.0
        %972 = vmatprep.subr.mxu0 0.0
        %973 = vmatpush2.msra.mxu0 0.0
        %974 = vmatprep.subr.mxu0 0.0
        %975 = vmatpush2.msra.mxu0 0.0
        %976 = vmatprep.subr.mxu0 0.0
        %977 = vmatpush2.msra.mxu0 0.0
        %978 = vmatprep.subr.mxu0 0.0
        %979 = vmatpush2.msra.mxu0 0.0
        %980 = vmatprep.subr.mxu0 0.0
        %981 = vmatpush2.msra.mxu0 0.0
        %982 = vmatprep.subr.mxu0 0.0
        %983 = vmatpush2.msra.mxu0 0.0
        %984 = vmatprep.subr.mxu0 0.0
        %985 = vmatpush2.msra.mxu0 0.0
        %986 = vmatprep.subr.mxu0 0.0
        %987 = vmatpush2.msra.mxu0 0.0
        %988 = vmatprep.mubr.f32.mxu0 0.0
        %989 = vmatmul.mubr.f32.gmra.mxu0 %v685
        %v990 = vpop.f32.mrf.mxu0
        %v991 = vadd.f32 %v846, %v990
        %v992 = vpop.f32.mrf.mxu0
        %993 = vmatprep.mubr.f32.mxu0 0.0
        %994 = vmatmul.mubr.f32.gmra.mxu0 %v688
        %v995 = vpop.f32.mrf.mxu0
        %v996 = vadd.f32 %v851, %v995
        %v997 = vpop.f32.mrf.mxu0
        %998 = vmatprep.mubr.f32.mxu0 0.0
        %999 = vmatmul.mubr.f32.gmra.mxu0 %v691
        %v1000 = vpop.f32.mrf.mxu0
        %v1001 = vadd.f32 %v856, %v1000
        %v1002 = vpop.f32.mrf.mxu0
        %1003 = vmatprep.mubr.f32.mxu0 0.0
        %1004 = vmatmul.mubr.f32.gmra.mxu0 %v694
        %v1005 = vpop.f32.mrf.mxu0
        %v1006 = vadd.f32 %v861, %v1005
        %v1007 = vpop.f32.mrf.mxu0
        %1008 = vmatprep.mubr.f32.mxu0 0.0
        %1009 = vmatmul.mubr.f32.gmra.mxu0 %v697
        %v1010 = vpop.f32.mrf.mxu0
        %v1011 = vadd.f32 %v866, %v1010
        %v1012 = vpop.f32.mrf.mxu0
        %1013 = vmatprep.mubr.f32.mxu0 0.0
        %1014 = vmatmul.mubr.f32.gmra.mxu0 %v700
        %v1015 = vpop.f32.mrf.mxu0
        %v1016 = vadd.f32 %v871, %v1015
        %v1017 = vpop.f32.mrf.mxu0
        %1018 = vmatprep.mubr.f32.mxu0 0.0
        %1019 = vmatmul.mubr.f32.gmra.mxu0 %v703
        %v1020 = vpop.f32.mrf.mxu0
        %v1021 = vadd.f32 %v876, %v1020
        %v1022 = vpop.f32.mrf.mxu0
        %1023 = vmatprep.mubr.f32.mxu0 0.0
        %1024 = vmatmul.mubr.f32.gmra.mxu0 %v706
        %v1025 = vpop.f32.mrf.mxu0
        %v1026 = vadd.f32 %v881, %v1025
        %v1027 = vpop.f32.mrf.mxu0
        %1028 = vmatprep.mubr.f32.mxu0 0.0
        %1029 = vmatmul.mubr.f32.gmra.mxu0 %v709
        %v1030 = vpop.f32.mrf.mxu0
        %v1031 = vadd.f32 %v886, %v1030
        %v1032 = vpop.f32.mrf.mxu0
        %1033 = vmatprep.mubr.f32.mxu0 0.0
        %1034 = vmatmul.mubr.f32.gmra.mxu0 %v712
        %v1035 = vpop.f32.mrf.mxu0
        %v1036 = vadd.f32 %v891, %v1035
        %v1037 = vpop.f32.mrf.mxu0
        %1038 = vmatprep.mubr.f32.mxu0 0.0
        %1039 = vmatmul.mubr.f32.gmra.mxu0 %v715
        %v1040 = vpop.f32.mrf.mxu0
        %v1041 = vadd.f32 %v896, %v1040
        %v1042 = vpop.f32.mrf.mxu0
        %1043 = vmatprep.mubr.f32.mxu0 0.0
        %1044 = vmatmul.mubr.f32.gmra.mxu0 %v718
        %v1045 = vpop.f32.mrf.mxu0
        %v1046 = vadd.f32 %v901, %v1045
        %v1047 = vpop.f32.mrf.mxu0
        %1048 = vmatprep.mubr.f32.mxu0 0.0
        %1049 = vmatmul.mubr.f32.gmra.mxu0 %v721
        %v1050 = vpop.f32.mrf.mxu0
        %v1051 = vadd.f32 %v906, %v1050
        %v1052 = vpop.f32.mrf.mxu0
        %1053 = vmatprep.mubr.f32.mxu0 0.0
        %1054 = vmatmul.mubr.f32.gmra.mxu0 %v724
        %v1055 = vpop.f32.mrf.mxu0
        %v1056 = vadd.f32 %v911, %v1055
        %v1057 = vpop.f32.mrf.mxu0
        %1058 = vmatprep.mubr.f32.mxu0 0.0
        %1059 = vmatmul.mubr.f32.gmra.mxu0 %v727
        %v1060 = vpop.f32.mrf.mxu0
        %v1061 = vadd.f32 %v916, %v1060
        %v1062 = vpop.f32.mrf.mxu0
        %1063 = vmatprep.mubr.f32.mxu0 0.0
        %1064 = vmatmul.mubr.f32.gmra.mxu0 %v730
        %v1065 = vpop.f32.mrf.mxu0
        %v1066 = vadd.f32 %v921, %v1065
        %v1067 = vpop.f32.mrf.mxu0
        %1068 = vdwg.mxu0
        %1069 = vst [vmem:[%s232] sm:$0xff] %v991
        %1070 = vst [vmem:[%s232 + $0x8] sm:$0xff] %v996
        %1071 = vst [vmem:[%s232 + $0x10] sm:$0xff] %v1001
        %1072 = vst [vmem:[%s232 + $0x18] sm:$0xff] %v1006
        %1073 = vst [vmem:[%s232 + $0x20] sm:$0xff] %v1011
        %1074 = vst [vmem:[%s232 + $0x28] sm:$0xff] %v1016
        %1075 = vst [vmem:[%s232 + $0x30] sm:$0xff] %v1021
        %1076 = vst [vmem:[%s232 + $0x38] sm:$0xff] %v1026
        %1077 = vst [vmem:[%s232 + $0x40] sm:$0xff] %v1031
        %1078 = vst [vmem:[%s232 + $0x48] sm:$0xff] %v1036
        %1079 = vst [vmem:[%s232 + $0x50] sm:$0xff] %v1041
        %1080 = vst [vmem:[%s232 + $0x58] sm:$0xff] %v1046
        %1081 = vst [vmem:[%s232 + $0x60] sm:$0xff] %v1051
        %1082 = vst [vmem:[%s232 + $0x68] sm:$0xff] %v1056
        %1083 = vst [vmem:[%s232 + $0x70] sm:$0xff] %v1061
        %1084 = vst [vmem:[%s232 + $0x78] sm:$0xff] %v1066
        %s1085 = sand.u32 %s68, 1
        %s1086 = sand.u32 %s68, 1
        %s1087 = smul.addr %s1086, 128
        %s1088 = scalar_lea.vmem [#allocation4], %s1087
        // Predicated region
        $region67: #{cell_forward_pallas.1} parent=61 // pred_check
          %p1089 = pneg %p78
        $region68: #{cell_forward_pallas.1} parent=61 // pred_check_branch
          %1091 = sbr.rel (%p1089) target = $region70
        $region69: #{cell_forward_pallas.1} parent=61 // pred_region
          %s1092 = smul.addr %s13, 8
          %s1093 = scalar_lea.vmem %s2, %s1092
          // Predicated region
          $region71: #{cell_forward_pallas.1} parent=69 // pred_check
            _
          $region72: #{cell_forward_pallas.1} parent=69 // pred_check_branch
            %1095 = sbr.rel (0) target = $region74
          $region73: #{cell_forward_pallas.1} parent=69 // pred_region
            // Predicated region
            $region75: #{cell_forward_pallas.1} parent=73 // pred_check
              _
            $region76: #{cell_forward_pallas.1} parent=73 // pred_check_branch
              %1097 = sbr.rel (0) target = $region78
            $region77: #{cell_forward_pallas.1} parent=73 // pred_region
              // Predicated region
              $region90: #{cell_forward_pallas.1} parent=77 // pred_check
                _
              $region91: #{cell_forward_pallas.1} parent=77 // pred_check_branch
                %1143 = sbr.rel (0) target = $region93
              $region92: #{cell_forward_pallas.1} parent=77 // pred_region
                loop: start=0, step=1, limit=1
                $region94: #{cell_forward_pallas.1} parent=92 // loop_pre_header
                  _
                $region95: #{cell_forward_pallas.1} parent=92 // loop_header
                  %s1145 = sphi 0, %s1149
                  %p1146 = scmp.ge.s32.totalorder %s1145, 1
                  %s1150 = sphi %s1088, %s1088
                  %s1151 = sphi %s1093, %s1093
                $region96: #{cell_forward_pallas.1} parent=92 // loop_header_branch
                  %1148 = sbr.rel (%p1146) target = $region100
                $region97: #{cell_forward_pallas.1} parent=92 // loop_body
                  %v1152 = vld [vmem:[%s1150] sm:$0xff]
                  %1153 = vst [vmem:[%s1151] sm:$0xff] %v1152
                  %v1154 = vld [vmem:[%s1150 + $0x8] sm:$0xff]
                  %1155 = vst [vmem:[%s1151 + $0x10] sm:$0xff] %v1154
                  %v1156 = vld [vmem:[%s1150 + $0x10] sm:$0xff]
                  %1157 = vst [vmem:[%s1151 + $0x20] sm:$0xff] %v1156
                  %v1158 = vld [vmem:[%s1150 + $0x18] sm:$0xff]
                  %1159 = vst [vmem:[%s1151 + $0x30] sm:$0xff] %v1158
                  %v1160 = vld [vmem:[%s1150 + $0x20] sm:$0xff]
                  %1161 = vst [vmem:[%s1151 + $0x40] sm:$0xff] %v1160
                  %v1162 = vld [vmem:[%s1150 + $0x28] sm:$0xff]
                  %1163 = vst [vmem:[%s1151 + $0x50] sm:$0xff] %v1162
                  %v1164 = vld [vmem:[%s1150 + $0x30] sm:$0xff]
                  %1165 = vst [vmem:[%s1151 + $0x60] sm:$0xff] %v1164
                  %v1166 = vld [vmem:[%s1150 + $0x38] sm:$0xff]
                  %1167 = vst [vmem:[%s1151 + $0x70] sm:$0xff] %v1166
                  %v1168 = vld [vmem:[%s1150 + $0x40] sm:$0xff]
                  %1169 = vst [vmem:[%s1151 + $0x80] sm:$0xff] %v1168
                  %v1170 = vld [vmem:[%s1150 + $0x48] sm:$0xff]
                  %1171 = vst [vmem:[%s1151 + $0x90] sm:$0xff] %v1170
                  %v1172 = vld [vmem:[%s1150 + $0x50] sm:$0xff]
                  %1173 = vst [vmem:[%s1151 + $0xa0] sm:$0xff] %v1172
                  %v1174 = vld [vmem:[%s1150 + $0x58] sm:$0xff]
                  %1175 = vst [vmem:[%s1151 + $0xb0] sm:$0xff] %v1174
                  %v1176 = vld [vmem:[%s1150 + $0x60] sm:$0xff]
                  %1177 = vst [vmem:[%s1151 + $0xc0] sm:$0xff] %v1176
                  %v1178 = vld [vmem:[%s1150 + $0x68] sm:$0xff]
                  %1179 = vst [vmem:[%s1151 + $0xd0] sm:$0xff] %v1178
                  %v1180 = vld [vmem:[%s1150 + $0x70] sm:$0xff]
                  %1181 = vst [vmem:[%s1151 + $0xe0] sm:$0xff] %v1180
                  %v1182 = vld [vmem:[%s1150 + $0x78] sm:$0xff]
                  %1183 = vst [vmem:[%s1151 + $0xf0] sm:$0xff] %v1182
                $region98: #{cell_forward_pallas.1} parent=92 // loop_footer
                  %s1149 = sadd.s32 1, %s1145
                $region99: #{cell_forward_pallas.1} parent=92 // loop_footer_branch
                  %1144 = sbr.rel target = $region95
                $region100: #{cell_forward_pallas.1} parent=92 // loop_exit
                  _
              $region93: #{cell_forward_pallas.1} parent=77 // pred_fallthru
                _
              // Predicated region
              $region101: #{cell_forward_pallas.1} parent=77 // pred_check
                _
              $region102: #{cell_forward_pallas.1} parent=77 // pred_check_branch
                %1185 = sbr.rel target = $region104
              $region103: #{cell_forward_pallas.1} parent=77 // pred_region
                _
              $region104: #{cell_forward_pallas.1} parent=77 // pred_fallthru
                _
            $region78: #{cell_forward_pallas.1} parent=73 // pred_fallthru
              _
            // Predicated region
            $region79: #{cell_forward_pallas.1} parent=73 // pred_check
              _
            $region80: #{cell_forward_pallas.1} parent=73 // pred_check_branch
              %1099 = sbr.rel target = $region82
            $region81: #{cell_forward_pallas.1} parent=73 // pred_region
              %s1101 = ssub.s32 256, 1
              loop: start=0, step=1, limit=1
              $region83: #{cell_forward_pallas.1} parent=81 // loop_pre_header
                _
              $region84: #{cell_forward_pallas.1} parent=81 // loop_header
                %s1103 = sphi 0, %s1107
                %p1104 = scmp.ge.s32.totalorder %s1103, 1
                %s1108 = sphi %s1088, %s1088
                %s1109 = sphi %s1093, %s1093
              $region85: #{cell_forward_pallas.1} parent=81 // loop_header_branch
                %1106 = sbr.rel (%p1104) target = $region89
              $region86: #{cell_forward_pallas.1} parent=81 // loop_body
                %v1110 = vld [vmem:[%s1108] sm:%s1101]
                %1111 = vst [vmem:[%s1109] sm:%s1101] %v1110
                %v1112 = vld [vmem:[%s1108 + $0x8] sm:%s1101]
                %1113 = vst [vmem:[%s1109 + $0x10] sm:%s1101] %v1112
                %v1114 = vld [vmem:[%s1108 + $0x10] sm:%s1101]
                %1115 = vst [vmem:[%s1109 + $0x20] sm:%s1101] %v1114
                %v1116 = vld [vmem:[%s1108 + $0x18] sm:%s1101]
                %1117 = vst [vmem:[%s1109 + $0x30] sm:%s1101] %v1116
                %v1118 = vld [vmem:[%s1108 + $0x20] sm:%s1101]
                %1119 = vst [vmem:[%s1109 + $0x40] sm:%s1101] %v1118
                %v1120 = vld [vmem:[%s1108 + $0x28] sm:%s1101]
                %1121 = vst [vmem:[%s1109 + $0x50] sm:%s1101] %v1120
                %v1122 = vld [vmem:[%s1108 + $0x30] sm:%s1101]
                %1123 = vst [vmem:[%s1109 + $0x60] sm:%s1101] %v1122
                %v1124 = vld [vmem:[%s1108 + $0x38] sm:%s1101]
                %1125 = vst [vmem:[%s1109 + $0x70] sm:%s1101] %v1124
                %v1126 = vld [vmem:[%s1108 + $0x40] sm:%s1101]
                %1127 = vst [vmem:[%s1109 + $0x80] sm:%s1101] %v1126
                %v1128 = vld [vmem:[%s1108 + $0x48] sm:%s1101]
                %1129 = vst [vmem:[%s1109 + $0x90] sm:%s1101] %v1128
                %v1130 = vld [vmem:[%s1108 + $0x50] sm:%s1101]
                %1131 = vst [vmem:[%s1109 + $0xa0] sm:%s1101] %v1130
                %v1132 = vld [vmem:[%s1108 + $0x58] sm:%s1101]
                %1133 = vst [vmem:[%s1109 + $0xb0] sm:%s1101] %v1132
                %v1134 = vld [vmem:[%s1108 + $0x60] sm:%s1101]
                %1135 = vst [vmem:[%s1109 + $0xc0] sm:%s1101] %v1134
                %v1136 = vld [vmem:[%s1108 + $0x68] sm:%s1101]
                %1137 = vst [vmem:[%s1109 + $0xd0] sm:%s1101] %v1136
                %v1138 = vld [vmem:[%s1108 + $0x70] sm:%s1101]
                %1139 = vst [vmem:[%s1109 + $0xe0] sm:%s1101] %v1138
                %v1140 = vld [vmem:[%s1108 + $0x78] sm:%s1101]
                %1141 = vst [vmem:[%s1109 + $0xf0] sm:%s1101] %v1140
              $region87: #{cell_forward_pallas.1} parent=81 // loop_footer
                %s1107 = sadd.s32 1, %s1103
              $region88: #{cell_forward_pallas.1} parent=81 // loop_footer_branch
                %1102 = sbr.rel target = $region84
              $region89: #{cell_forward_pallas.1} parent=81 // loop_exit
                _
            $region82: #{cell_forward_pallas.1} parent=73 // pred_fallthru
              _
          $region74: #{cell_forward_pallas.1} parent=69 // pred_fallthru
            _
          %1186 = vnop
        $region70: #{cell_forward_pallas.1} parent=61 // pred_fallthru
          _
      $region62: #{cell_forward_pallas.1} parent=5 // pred_fallthru
        _
      %p1187 = scmp.le.s32.totalorder 2, %s8
      // Predicated region
      $region105: #{cell_forward_pallas.1} parent=5 // pred_check
        %p1188 = pneg %p1187
      $region106: #{cell_forward_pallas.1} parent=5 // pred_check_branch
        %1190 = sbr.rel (%p1188) target = $region108
      $region107: #{cell_forward_pallas.1} parent=5 // pred_region
        %s1191 = ssub.s32 %s8, 2
        // Predicated region
        $region109: #{cell_forward_pallas.1} parent=107 // pred_check
          %p1192 = pneg %p84
        $region110: #{cell_forward_pallas.1} parent=107 // pred_check_branch
          %1194 = sbr.rel (%p1192) target = $region112
        $region111: #{cell_forward_pallas.1} parent=107 // pred_region
          %s1195 = sand.u32 %s69, 1
          %s1196 = sand.u32 %s69, 1
          %s1197 = smul.addr %s1196, 128
          %s1198 = scalar_lea.vmem [#allocation4], %s1197
        $region112: #{cell_forward_pallas.1} parent=107 // pred_fallthru
          _
      $region108: #{cell_forward_pallas.1} parent=5 // pred_fallthru
        _
    $region6: #{cell_forward_pallas.1} parent=1 // loop_footer
      %s12 = sadd.s32 1, %s8
    $region7: #{cell_forward_pallas.1} parent=1 // loop_footer_branch
      %7 = sbr.rel target = $region3
    $region8: #{cell_forward_pallas.1} parent=1 // loop_exit
      _

</llo_original>
